<compile_context>
chip_gen: v5e
topology: v5e:2x2
jax: 0.10.0
libtpu: 0.0.40
codegen_flags: <defaults>
</compile_context>

<pallas_src>
import math
import functools

import jax
import jax.numpy as jnp
from jax.experimental import pallas as pl
from jax.experimental.pallas import tpu as pltpu


_LN_EPS = 1e-5


# --------------------------------------------------------------------------
# helpers
# --------------------------------------------------------------------------

def _tile(dim, target, base, min_blocks=1):
    """Largest block <= target (and <= dim//min_blocks when possible) that is a
    multiple of `base` and divides `dim`; falls back to the full dimension."""
    cap = target
    if min_blocks > 1 and dim >= min_blocks * base:
        cap = min(cap, dim // min_blocks)
    if dim <= cap:
        return dim
    t = (cap // base) * base
    while t >= base:
        if dim % t == 0:
            return t
        t -= base
    return dim


def _layernorm(x, g_ref, b_ref):
    """f32 LayerNorm over the last axis; gamma/beta come from (1, C) refs."""
    mean = jnp.mean(x, axis=-1, keepdims=True)
    var = jnp.mean(jnp.square(x - mean), axis=-1, keepdims=True)
    return ((x - mean) * jax.lax.rsqrt(var + _LN_EPS)
            * g_ref[...].astype(jnp.float32) + b_ref[...].astype(jnp.float32))


def _attn_heads(q, k, v, bias, num_heads):
    """Per-head softmax attention on lane slices (no HBM head transpose).

    q: (Sq, C) f32, already scaled by 1/sqrt(Dh).  k, v: (Sk, C) f32.
    bias: (Sq, Sk) f32 additive mask.  Returns (o (Sq, C) f32 lane-dense,
    p_avg (Sq, Sk) f32 head-averaged probabilities).
    """
    Sq, C = q.shape
    Sk = k.shape[0]
    Dh = C // num_heads
    outs = []
    p_sum = jnp.zeros((Sq, Sk), jnp.float32)
    for h in range(num_heads):
        lo = h * Dh
        qh = q[:, lo:lo + Dh].astype(jnp.bfloat16)
        kh = k[:, lo:lo + Dh].astype(jnp.bfloat16)
        vh = v[:, lo:lo + Dh].astype(jnp.bfloat16)
        # QK^T without materializing a transpose (contract over Dh).
        s = jax.lax.dot_general(qh, kh, (((1,), (1,)), ((), ())),
                                preferred_element_type=jnp.float32)
        s = s + bias
        m = jnp.max(s, axis=-1, keepdims=True)
        e = jnp.exp(s - m)
        p = e * pl.reciprocal(jnp.sum(e, axis=-1, keepdims=True), approx=True)
        p_sum = p_sum + p
        outs.append(jnp.dot(p.astype(jnp.bfloat16), vh,
                            preferred_element_type=jnp.float32))
    o = jnp.concatenate(outs, axis=-1)            # (Sq, C) lane-dense
    return o, p_sum * (1.0 / num_heads)


# --------------------------------------------------------------------------
# Kernel 1: fused self-attention block
#   out = S + Wo @ MHA(LN1(S), LN1(S), LN1(S)) ;  grid = (B,)
# --------------------------------------------------------------------------

def _self_attn_block_kernel(s_ref, g_ref, b_ref, wqkv_ref, bqkv_ref,
                            wo_ref, bo_ref, abias_ref, kpm_ref,
                            o_ref, p_ref, *, num_heads):
    x = s_ref[0].astype(jnp.float32)              # (Sq, C)
    C = x.shape[-1]
    Dh = C // num_heads
    xn = _layernorm(x, g_ref, b_ref)

    qkv = jnp.dot(xn.astype(jnp.bfloat16), wqkv_ref[...],
                  preferred_element_type=jnp.float32)
    qkv = qkv + bqkv_ref[...].astype(jnp.float32)  # (Sq, 3C)

    scale = 1.0 / math.sqrt(Dh)
    q = qkv[:, :C] * scale                         # fold scale into Q (Dh-wide)
    k = qkv[:, C:2 * C]
    v = qkv[:, 2 * C:]

    bias = abias_ref[...] + kpm_ref[0]             # (Sq,Sq) + (1,Sq)
    o, p_avg = _attn_heads(q, k, v, bias, num_heads)

    out = jnp.dot(o.astype(jnp.bfloat16), wo_ref[...],
                  preferred_element_type=jnp.float32)
    out = out + bo_ref[...].astype(jnp.float32)
    o_ref[0] = (x + out).astype(o_ref.dtype)       # residual fused (dropout_1 = id)
    p_ref[0] = p_avg.astype(p_ref.dtype)


def self_attn_block(S, attn_bias, kpm_bias, params, num_heads):
    B, Sq, C = S.shape
    kernel = functools.partial(_self_attn_block_kernel, num_heads=num_heads)
    return pl.pallas_call(
        kernel,
        grid=(B,),
        in_specs=[
            pl.BlockSpec((1, Sq, C), lambda b: (b, 0, 0)),       # S
            pl.BlockSpec((1, C), lambda b: (0, 0)),              # ln1_g
            pl.BlockSpec((1, C), lambda b: (0, 0)),              # ln1_b
            pl.BlockSpec((C, 3 * C), lambda b: (0, 0)),          # Wqkv (bf16)
            pl.BlockSpec((1, 3 * C), lambda b: (0, 0)),          # bqkv
            pl.BlockSpec((C, C), lambda b: (0, 0)),              # Wo (bf16)
            pl.BlockSpec((1, C), lambda b: (0, 0)),              # bo
            pl.BlockSpec((Sq, Sq), lambda b: (0, 0)),            # shared attn bias
            pl.BlockSpec((1, 1, Sq), lambda b: (b, 0, 0)),       # per-batch kpm bias
        ],
        out_specs=(
            pl.BlockSpec((1, Sq, C), lambda b: (b, 0, 0)),
            pl.BlockSpec((1, Sq, Sq), lambda b: (b, 0, 0)),
        ),
        out_shape=(
            jax.ShapeDtypeStruct((B, Sq, C), S.dtype),
            jax.ShapeDtypeStruct((B, Sq, Sq), jnp.float32),
        ),
        compiler_params=pltpu.CompilerParams(
            dimension_semantics=("parallel",)),
    )(S, params["ln1_g"].reshape(1, C), params["ln1_b"].reshape(1, C),
      params["sa_w_qkv"], params["sa_b_qkv"].reshape(1, 3 * C),
      params["sa_wo"], params["sa_bo"].reshape(1, C),
      attn_bias, kpm_bias)


# --------------------------------------------------------------------------
# Kernel 2: fused cross-attention block (downsampler fused in)
#   ZE_c = ZE @ Wd + bd ; out = S + Wo @ MHA(LN2(S), ZE_c, ZE_c) ;  grid = (B,)
# --------------------------------------------------------------------------

def _cross_attn_block_kernel(s_ref, z_ref, dw_ref, db_ref, g_ref, b_ref,
                             wq_ref, bq_ref, wkv_ref, bkv_ref, wo_ref, bo_ref,
                             abias_ref, kpm_ref, o_ref, p_ref, *, num_heads):
    x = s_ref[0].astype(jnp.float32)              # (Sq, C)
    C = x.shape[-1]
    Dh = C // num_heads
    scale = 1.0 / math.sqrt(Dh)

    xn = _layernorm(x, g_ref, b_ref)
    q = jnp.dot(xn.astype(jnp.bfloat16), wq_ref[...],
                preferred_element_type=jnp.float32)
    q = (q + bq_ref[...].astype(jnp.float32)) * scale

    # downsampler tdim -> cdim, fused (ZE_c never round-trips HBM)
    z = jnp.dot(z_ref[0].astype(jnp.bfloat16), dw_ref[...],
                preferred_element_type=jnp.float32)
    z = z + db_ref[...].astype(jnp.float32)        # (K_lat, C)

    kv = jnp.dot(z.astype(jnp.bfloat16), wkv_ref[...],
                 preferred_element_type=jnp.float32)
    kv = kv + bkv_ref[...].astype(jnp.float32)     # (K_lat, 2C)
    k = kv[:, :C]
    v = kv[:, C:]

    bias = abias_ref[...] + kpm_ref[0]             # (Sq,K) + (1,K)
    o, p_avg = _attn_heads(q, k, v, bias, num_heads)

    out = jnp.dot(o.astype(jnp.bfloat16), wo_ref[...],
                  preferred_element_type=jnp.float32)
    out = out + bo_ref[...].astype(jnp.float32)
    o_ref[0] = (x + out).astype(o_ref.dtype)       # residual fused (dropout_2 = id)
    p_ref[0] = p_avg.astype(p_ref.dtype)


def cross_attn_block(S, ZE, attn_bias, kpm_bias, params, num_heads):
    B, Sq, C = S.shape
    _, K_lat, T = ZE.shape
    kernel = functools.partial(_cross_attn_block_kernel, num_heads=num_heads)
    return pl.pallas_call(
        kernel,
        grid=(B,),
        in_specs=[
            pl.BlockSpec((1, Sq, C), lambda b: (b, 0, 0)),       # S
            pl.BlockSpec((1, K_lat, T), lambda b: (b, 0, 0)),    # ZE
            pl.BlockSpec((T, C), lambda b: (0, 0)),              # down_w (bf16)
            pl.BlockSpec((1, C), lambda b: (0, 0)),              # down_b
            pl.BlockSpec((1, C), lambda b: (0, 0)),              # ln2_g
            pl.BlockSpec((1, C), lambda b: (0, 0)),              # ln2_b
            pl.BlockSpec((C, C), lambda b: (0, 0)),              # Wq (bf16)
            pl.BlockSpec((1, C), lambda b: (0, 0)),              # bq
            pl.BlockSpec((C, 2 * C), lambda b: (0, 0)),          # Wkv (bf16)
            pl.BlockSpec((1, 2 * C), lambda b: (0, 0)),          # bkv
            pl.BlockSpec((C, C), lambda b: (0, 0)),              # Wo (bf16)
            pl.BlockSpec((1, C), lambda b: (0, 0)),              # bo
            pl.BlockSpec((Sq, K_lat), lambda b: (0, 0)),         # shared attn bias
            pl.BlockSpec((1, 1, K_lat), lambda b: (b, 0, 0)),    # per-batch kpm bias
        ],
        out_specs=(
            pl.BlockSpec((1, Sq, C), lambda b: (b, 0, 0)),
            pl.BlockSpec((1, Sq, K_lat), lambda b: (b, 0, 0)),
        ),
        out_shape=(
            jax.ShapeDtypeStruct((B, Sq, C), S.dtype),
            jax.ShapeDtypeStruct((B, Sq, K_lat), jnp.float32),
        ),
        compiler_params=pltpu.CompilerParams(
            dimension_semantics=("parallel",)),
    )(S, ZE,
      params["down_w"], params["down_b"].reshape(1, C),
      params["ln2_g"].reshape(1, C), params["ln2_b"].reshape(1, C),
      params["ca_wq"], params["ca_bq"].reshape(1, C),
      params["ca_w_kv"], params["ca_b_kv"].reshape(1, 2 * C),
      params["ca_wo"], params["ca_bo"].reshape(1, C),
      attn_bias, kpm_bias)


# --------------------------------------------------------------------------
# Kernel 3: fused FFN block:  out = S + relu(LN3(S) @ W1 + b1) @ W2 + b2
#   grid = (M//tm, hidden//th); LN result and accumulator stay in VMEM.
# --------------------------------------------------------------------------

def _ffn_kernel(s_ref, g_ref, b_ref, w1_ref, b1_ref, w2_ref, b2_ref,
                o_ref, xn_ref, acc_ref):
    h = pl.program_id(1)

    @pl.when(h == 0)
    def _():
        xn_ref[...] = _layernorm(s_ref[...].astype(jnp.float32), g_ref, b_ref)
        acc_ref[...] = jnp.zeros_like(acc_ref)

    hid = jnp.dot(xn_ref[...].astype(jnp.bfloat16), w1_ref[...],
                  preferred_element_type=jnp.float32)
    hid = jnp.maximum(hid + b1_ref[...].astype(jnp.float32), 0.0)
    acc_ref[...] += jnp.dot(hid.astype(jnp.bfloat16), w2_ref[...],
                            preferred_element_type=jnp.float32)

    @pl.when(h == pl.num_programs(1) - 1)
    def _():
        o_ref[...] = (acc_ref[...] + b2_ref[...].astype(jnp.float32)
                      + s_ref[...].astype(jnp.float32)).astype(o_ref.dtype)


def ffn_block(s2, gamma, beta, w1, b1, w2, b2, *, tm=256, th=512):
    """Residual FFN with fused LayerNorm.  s2: (M, C), w1: (C, Hd), w2: (Hd, C)."""
    M, C = s2.shape
    Hd = w1.shape[1]
    tm = _tile(M, tm, 8, min_blocks=2)     # >=2 row blocks keeps both v7x TCs busy
    th = _tile(Hd, th, 128)
    grid = (M // tm, Hd // th)
    return pl.pallas_call(
        _ffn_kernel,
        grid=grid,
        in_specs=[
            pl.BlockSpec((tm, C), lambda i, h: (i, 0)),
            pl.BlockSpec((1, C), lambda i, h: (0, 0)),
            pl.BlockSpec((1, C), lambda i, h: (0, 0)),
            pl.BlockSpec((C, th), lambda i, h: (0, h)),
            pl.BlockSpec((1, th), lambda i, h: (0, h)),
            pl.BlockSpec((th, C), lambda i, h: (h, 0)),
            pl.BlockSpec((1, C), lambda i, h: (0, 0)),
        ],
        out_specs=pl.BlockSpec((tm, C), lambda i, h: (i, 0)),
        out_shape=jax.ShapeDtypeStruct((M, C), s2.dtype),
        scratch_shapes=[pltpu.VMEM((tm, C), jnp.float32),
                        pltpu.VMEM((tm, C), jnp.float32)],
        compiler_params=pltpu.CompilerParams(
            dimension_semantics=("parallel", "arbitrary")),
    )(s2, gamma.reshape(1, C), beta.reshape(1, C), w1, b1.reshape(1, Hd),
      w2, b2.reshape(1, C))


# --------------------------------------------------------------------------
# CADDecoderLayer forward (mask glue in plain JAX, all compute in 3 kernels)
# --------------------------------------------------------------------------

def _attn_mask_to_bias(am, shape):
    if am is None:
        return jnp.zeros(shape, jnp.float32)
    if am.dtype == jnp.bool_:
        return jnp.where(am, -1e9, 0.0).astype(jnp.float32)
    return am.astype(jnp.float32)


def cad_decoder_layer(S, ZE, mask_cad_dict, cross_attn_mask_dict, params, num_heads):
    B, Sq, C = S.shape
    _, K_lat, _ = ZE.shape

    # --- self-attention mask biases (tiny plain-JAX glue, no per-head broadcast) ---
    kpm3 = mask_cad_dict["key_padding_mask"]             # (B, Sq, X) bool, True = pad
    self_kpm = jnp.all(kpm3, axis=2)                     # (B, Sq)
    sa_kpm_bias = jnp.where(self_kpm, -1e9, 0.0).astype(jnp.float32).reshape(B, 1, Sq)
    sa_attn_bias = _attn_mask_to_bias(mask_cad_dict.get("attn_mask"), (Sq, Sq))

    # self attention block (LN1 + QKV + attention + out-proj + residual, one kernel)
    S, sa_score = self_attn_block(S, sa_attn_bias, sa_kpm_bias, params, num_heads)

    # --- cross-attention mask biases ---
    ca_kpm = cross_attn_mask_dict.get("key_padding_mask")
    if ca_kpm is None:
        ca_kpm_bias = jnp.zeros((B, 1, K_lat), jnp.float32)
    else:
        ca_kpm_bias = jnp.where(ca_kpm, -1e9, 0.0).astype(jnp.float32).reshape(B, 1, K_lat)
    ca_attn_bias = _attn_mask_to_bias(cross_attn_mask_dict.get("attn_mask"), (Sq, K_lat))

    # cross attention block (downsampler + LN2 + Q/KV proj + attention + residual)
    S, ca_score = cross_attn_block(S, ZE, ca_attn_bias, ca_kpm_bias, params, num_heads)

    # feed forward block (LN3 + MLP + residual; dropout_3 = identity)
    # TODO(synk): FeedForwardLayer source not given; assuming Linear(C,4C)->ReLU->Linear(4C,C).
    S_flat = ffn_block(S.reshape(B * Sq, C), params["ln3_g"], params["ln3_b"],
                       params["ff_w1"], params["ff_b1"],
                       params["ff_w2"], params["ff_b2"])
    S = S_flat.reshape(B, Sq, C)

    # TODO(synk): attention scores returned head-averaged (PyTorch MHA default);
    # the custom Text2CAD MultiHeadAttention may return per-head weights instead.
    attention_scores = {"ca": ca_score, "sa": sa_score}
    return S, attention_scores


# --------------------------------------------------------------------------
# Deterministic parameter init (weights stored bf16 for the MXU, biases/LN f32)
# --------------------------------------------------------------------------

def init_params(key, tdim, cdim, ffn_mult=4):
    ks = iter(jax.random.split(key, 16))

    def w(shape):
        return (jax.random.normal(next(ks), shape, jnp.float32) * 0.02
                ).astype(jnp.bfloat16)

    def zeros(n):
        return jnp.zeros((n,), jnp.float32)

    hidden = ffn_mult * cdim
    # TODO(synk): CrossAttention internal projection dims assumed identical to the
    # self-attention MHA (all projections -> cdim, keys/values from downsampled ZE).
    return {
        # self attention (fused Wq|Wk|Wv)
        "sa_w_qkv": w((cdim, 3 * cdim)), "sa_b_qkv": zeros(3 * cdim),
        "sa_wo": w((cdim, cdim)), "sa_bo": zeros(cdim),
        # cross attention (fused Wk|Wv)
        "ca_wq": w((cdim, cdim)), "ca_bq": zeros(cdim),
        "ca_w_kv": w((cdim, 2 * cdim)), "ca_b_kv": zeros(2 * cdim),
        "ca_wo": w((cdim, cdim)), "ca_bo": zeros(cdim),
        # downsampler tdim -> cdim
        "down_w": w((tdim, cdim)), "down_b": zeros(cdim),
        # layernorms
        "ln1_g": jnp.ones((cdim,), jnp.float32), "ln1_b": zeros(cdim),
        "ln2_g": jnp.ones((cdim,), jnp.float32), "ln2_b": zeros(cdim),
        "ln3_g": jnp.ones((cdim,), jnp.float32), "ln3_b": zeros(cdim),
        # feed forward
        "ff_w1": w((cdim, hidden)), "ff_b1": zeros(hidden),
        "ff_w2": w((hidden, cdim)), "ff_b2": zeros(cdim),
    }


# --------------------------------------------------------------------------
# Demo
# --------------------------------------------------------------------------

if __name__ == "__main__":
    B, Sq, K_lat = 2, 16, 8
    cdim, tdim, num_heads = 128, 128, 8

    root = jax.random.PRNGKey(0)
    k_param, k_s, k_ze = jax.random.split(root, 3)

    params = init_params(k_param, tdim, cdim)

    S = jax.random.normal(k_s, (B, Sq, cdim), jnp.float32)
    ZE = jax.random.normal(k_ze, (B, K_lat, tdim), jnp.float32)

    # mask_cad_dict: 3-D key_padding_mask (reduced with all() over axis 2) + causal attn_mask
    key_padding_mask = jnp.zeros((B, Sq, 2), bool)
    key_padding_mask = key_padding_mask.at[1, Sq - 1, :].set(True)   # pad last token of batch 1
    attn_mask = jnp.triu(jnp.ones((Sq, Sq), bool), k=1)              # True = not allowed (causal)
    mask_cad_dict = {"attn_mask": attn_mask, "key_padding_mask": key_padding_mask}
    cross_attn_mask_dict = {"attn_mask": None, "key_padding_mask": None}

    out, scores = cad_decoder_layer(S, ZE, mask_cad_dict, cross_attn_mask_dict,
                                    params, num_heads)
    jax.block_until_ready(out)
    jax.block_until_ready(scores["sa"])
    jax.block_until_ready(scores["ca"])

    assert out.shape == (B, Sq, cdim)
    assert scores["sa"].shape == (B, Sq, Sq)          # head-averaged attention weights
    assert scores["ca"].shape == (B, Sq, K_lat)
    assert bool(jnp.all(jnp.isfinite(out)))
    assert bool(jnp.all(jnp.isfinite(scores["sa"])))
    assert bool(jnp.all(jnp.isfinite(scores["ca"])))
    print("KERNEL_OK")
</pallas_src>

<mosaic_0001>
module attributes {stable_mosaic.version = 11 : i64} {
  func.func @_self_attn_block_kernel(%arg0: i32, %arg1: memref<1x16x128xf32, #tpu.memory_space<vmem>>, %arg2: memref<1x128xf32, #tpu.memory_space<vmem>>, %arg3: memref<1x128xf32, #tpu.memory_space<vmem>>, %arg4: memref<128x384xbf16, #tpu.memory_space<vmem>>, %arg5: memref<1x384xf32, #tpu.memory_space<vmem>>, %arg6: memref<128x128xbf16, #tpu.memory_space<vmem>>, %arg7: memref<1x128xf32, #tpu.memory_space<vmem>>, %arg8: memref<16x16xf32, #tpu.memory_space<vmem>>, %arg9: memref<1x1x16xf32, #tpu.memory_space<vmem>>, %arg10: memref<1x16x128xf32, #tpu.memory_space<vmem>>, %arg11: memref<1x16x16xf32, #tpu.memory_space<vmem>>) attributes {dimension_semantics = [#tpu.dimension_semantics<parallel>], iteration_bounds = array<i64: 2>, scalar_prefetch = 0 : i64, scratch_operands = 0 : i64, tpu.core_type = #tpu.core_type<tc>, window_params = [{transform_indices = @transform_0, window_bounds = array<i64: 1, 16, 128>}, {pipeline_mode = #tpu.pipeline_mode<synchronous>, transform_indices = @transform_1, window_bounds = array<i64: 1, 128>}, {pipeline_mode = #tpu.pipeline_mode<synchronous>, transform_indices = @transform_2, window_bounds = array<i64: 1, 128>}, {pipeline_mode = #tpu.pipeline_mode<synchronous>, transform_indices = @transform_3, window_bounds = array<i64: 128, 384>}, {pipeline_mode = #tpu.pipeline_mode<synchronous>, transform_indices = @transform_4, window_bounds = array<i64: 1, 384>}, {pipeline_mode = #tpu.pipeline_mode<synchronous>, transform_indices = @transform_5, window_bounds = array<i64: 128, 128>}, {pipeline_mode = #tpu.pipeline_mode<synchronous>, transform_indices = @transform_6, window_bounds = array<i64: 1, 128>}, {pipeline_mode = #tpu.pipeline_mode<synchronous>, transform_indices = @transform_7, window_bounds = array<i64: 16, 16>}, {transform_indices = @transform_8, window_bounds = array<i64: 1, 1, 16>}, {transform_indices = @transform_9, window_bounds = array<i64: 1, 16, 128>}, {transform_indices = @transform_10, window_bounds = array<i64: 1, 16, 16>}]} {
    %c0 = arith.constant 0 : index
    %c0_0 = arith.constant 0 : index
    %c0_1 = arith.constant 0 : index
    %0 = vector.load %arg1[%c0, %c0_0, %c0_1] : memref<1x16x128xf32, #tpu.memory_space<vmem>>, vector<1x16x128xf32>
    %1 = vector.shape_cast %0 : vector<1x16x128xf32> to vector<16x128xf32>
    %cst = arith.constant dense<0.000000e+00> : vector<16xf32>
    %2 = vector.multi_reduction <add>, %1, %cst [1] : vector<16x128xf32> to vector<16xf32>
    %3 = vector.shape_cast %2 : vector<16xf32> to vector<16x1xf32>
    %cst_2 = arith.constant 1.280000e+02 : f32
    %4 = vector.broadcast %cst_2 : f32 to vector<16x1xf32>
    %5 = arith.divf %3, %4 : vector<16x1xf32>
    %6 = vector.broadcast %5 : vector<16x1xf32> to vector<16x128xf32>
    %7 = arith.subf %1, %6 : vector<16x128xf32>
    %8 = arith.mulf %7, %7 : vector<16x128xf32>
    %cst_3 = arith.constant dense<0.000000e+00> : vector<16xf32>
    %9 = vector.multi_reduction <add>, %8, %cst_3 [1] : vector<16x128xf32> to vector<16xf32>
    %10 = vector.shape_cast %9 : vector<16xf32> to vector<16x1xf32>
    %cst_4 = arith.constant 1.280000e+02 : f32
    %11 = vector.broadcast %cst_4 : f32 to vector<16x1xf32>
    %12 = arith.divf %10, %11 : vector<16x1xf32>
    %13 = vector.broadcast %5 : vector<16x1xf32> to vector<16x128xf32>
    %14 = arith.subf %1, %13 : vector<16x128xf32>
    %cst_5 = arith.constant 9.99999974E-6 : f32
    %15 = vector.broadcast %cst_5 : f32 to vector<16x1xf32>
    %16 = arith.addf %12, %15 : vector<16x1xf32>
    %17 = math.rsqrt %16 : vector<16x1xf32>
    %18 = vector.broadcast %17 : vector<16x1xf32> to vector<16x128xf32>
    %19 = arith.mulf %14, %18 : vector<16x128xf32>
    %c0_6 = arith.constant 0 : index
    %c0_7 = arith.constant 0 : index
    %20 = vector.load %arg2[%c0_6, %c0_7] : memref<1x128xf32, #tpu.memory_space<vmem>>, vector<1x128xf32>
    %21 = vector.broadcast %20 : vector<1x128xf32> to vector<16x128xf32>
    %22 = arith.mulf %19, %21 : vector<16x128xf32>
    %c0_8 = arith.constant 0 : index
    %c0_9 = arith.constant 0 : index
    %23 = vector.load %arg3[%c0_8, %c0_9] : memref<1x128xf32, #tpu.memory_space<vmem>>, vector<1x128xf32>
    %24 = vector.broadcast %23 : vector<1x128xf32> to vector<16x128xf32>
    %25 = arith.addf %22, %24 : vector<16x128xf32>
    %26 = arith.truncf %25 : vector<16x128xf32> to vector<16x128xbf16>
    %c0_10 = arith.constant 0 : index
    %c0_11 = arith.constant 0 : index
    %27 = vector.load %arg4[%c0_10, %c0_11] : memref<128x384xbf16, #tpu.memory_space<vmem>>, vector<128x384xbf16>
    %cst_12 = arith.constant dense<0.000000e+00> : vector<16x384xf32>
    %28 = tpu.matmul %26, %27, %cst_12 {dimension_numbers = #tpu.dot_dimension_numbers<[1], [0], [0], [1], [0, 0, 1, 1], [], []>} : vector<16x128xbf16>, vector<128x384xbf16>, vector<16x384xf32> -> vector<16x384xf32>
    %c0_13 = arith.constant 0 : index
    %c0_14 = arith.constant 0 : index
    %29 = vector.load %arg5[%c0_13, %c0_14] : memref<1x384xf32, #tpu.memory_space<vmem>>, vector<1x384xf32>
    %30 = vector.broadcast %29 : vector<1x384xf32> to vector<16x384xf32>
    %31 = arith.addf %28, %30 : vector<16x384xf32>
    %32 = vector.extract_strided_slice %31 {offsets = [0, 0], sizes = [16, 128], strides = [1, 1]} : vector<16x384xf32> to vector<16x128xf32>
    %cst_15 = arith.constant 2.500000e-01 : f32
    %33 = vector.broadcast %cst_15 : f32 to vector<16x128xf32>
    %34 = arith.mulf %32, %33 : vector<16x128xf32>
    %35 = vector.extract_strided_slice %31 {offsets = [0, 128], sizes = [16, 128], strides = [1, 1]} : vector<16x384xf32> to vector<16x128xf32>
    %36 = vector.extract_strided_slice %31 {offsets = [0, 256], sizes = [16, 128], strides = [1, 1]} : vector<16x384xf32> to vector<16x128xf32>
    %c0_16 = arith.constant 0 : index
    %c0_17 = arith.constant 0 : index
    %37 = vector.load %arg8[%c0_16, %c0_17] : memref<16x16xf32, #tpu.memory_space<vmem>>, vector<16x16xf32>
    %c0_18 = arith.constant 0 : index
    %c0_19 = arith.constant 0 : index
    %c0_20 = arith.constant 0 : index
    %38 = vector.load %arg9[%c0_18, %c0_19, %c0_20] : memref<1x1x16xf32, #tpu.memory_space<vmem>>, vector<1x1x16xf32>
    %39 = vector.shape_cast %38 : vector<1x1x16xf32> to vector<1x16xf32>
    %40 = vector.broadcast %39 : vector<1x16xf32> to vector<16x16xf32>
    %41 = arith.addf %37, %40 : vector<16x16xf32>
    %cst_21 = arith.constant 0.000000e+00 : f32
    %42 = vector.broadcast %cst_21 : f32 to vector<16x16xf32>
    %43 = vector.extract_strided_slice %34 {offsets = [0, 0], sizes = [16, 16], strides = [1, 1]} : vector<16x128xf32> to vector<16x16xf32>
    %44 = arith.truncf %43 : vector<16x16xf32> to vector<16x16xbf16>
    %45 = vector.extract_strided_slice %35 {offsets = [0, 0], sizes = [16, 16], strides = [1, 1]} : vector<16x128xf32> to vector<16x16xf32>
    %46 = arith.truncf %45 : vector<16x16xf32> to vector<16x16xbf16>
    %47 = vector.extract_strided_slice %36 {offsets = [0, 0], sizes = [16, 16], strides = [1, 1]} : vector<16x128xf32> to vector<16x16xf32>
    %48 = arith.truncf %47 : vector<16x16xf32> to vector<16x16xbf16>
    %cst_22 = arith.constant dense<0.000000e+00> : vector<16x16xf32>
    %49 = tpu.matmul %44, %46, %cst_22 {dimension_numbers = #tpu.dot_dimension_numbers<[1], [1], [0], [0], [0, 0, 1, 0], [], []>} : vector<16x16xbf16>, vector<16x16xbf16>, vector<16x16xf32> -> vector<16x16xf32>
    %50 = arith.addf %49, %41 : vector<16x16xf32>
    %cst_23 = arith.constant dense<0xFF800000> : vector<16xf32>
    %51 = vector.multi_reduction <maximumf>, %50, %cst_23 [1] : vector<16x16xf32> to vector<16xf32>
    %52 = vector.shape_cast %51 : vector<16xf32> to vector<16x1xf32>
    %53 = vector.broadcast %52 : vector<16x1xf32> to vector<16x16xf32>
    %54 = arith.subf %50, %53 : vector<16x16xf32>
    %55 = math.exp %54 : vector<16x16xf32>
    %cst_24 = arith.constant dense<0.000000e+00> : vector<16xf32>
    %56 = vector.multi_reduction <add>, %55, %cst_24 [1] : vector<16x16xf32> to vector<16xf32>
    %57 = vector.shape_cast %56 : vector<16xf32> to vector<16x1xf32>
    %58 = tpu.reciprocal %57 {approx = true} : vector<16x1xf32> -> vector<16x1xf32>
    %59 = vector.broadcast %58 : vector<16x1xf32> to vector<16x16xf32>
    %60 = arith.mulf %55, %59 : vector<16x16xf32>
    %61 = arith.addf %42, %60 : vector<16x16xf32>
    %62 = arith.truncf %60 : vector<16x16xf32> to vector<16x16xbf16>
    %cst_25 = arith.constant dense<0.000000e+00> : vector<16x16xf32>
    %63 = tpu.matmul %62, %48, %cst_25 {dimension_numbers = #tpu.dot_dimension_numbers<[1], [0], [0], [1], [0, 0, 1, 1], [], []>} : vector<16x16xbf16>, vector<16x16xbf16>, vector<16x16xf32> -> vector<16x16xf32>
    %64 = vector.extract_strided_slice %34 {offsets = [0, 16], sizes = [16, 16], strides = [1, 1]} : vector<16x128xf32> to vector<16x16xf32>
    %65 = arith.truncf %64 : vector<16x16xf32> to vector<16x16xbf16>
    %66 = vector.extract_strided_slice %35 {offsets = [0, 16], sizes = [16, 16], strides = [1, 1]} : vector<16x128xf32> to vector<16x16xf32>
    %67 = arith.truncf %66 : vector<16x16xf32> to vector<16x16xbf16>
    %68 = vector.extract_strided_slice %36 {offsets = [0, 16], sizes = [16, 16], strides = [1, 1]} : vector<16x128xf32> to vector<16x16xf32>
    %69 = arith.truncf %68 : vector<16x16xf32> to vector<16x16xbf16>
    %cst_26 = arith.constant dense<0.000000e+00> : vector<16x16xf32>
    %70 = tpu.matmul %65, %67, %cst_26 {dimension_numbers = #tpu.dot_dimension_numbers<[1], [1], [0], [0], [0, 0, 1, 0], [], []>} : vector<16x16xbf16>, vector<16x16xbf16>, vector<16x16xf32> -> vector<16x16xf32>
    %71 = arith.addf %70, %41 : vector<16x16xf32>
    %cst_27 = arith.constant dense<0xFF800000> : vector<16xf32>
    %72 = vector.multi_reduction <maximumf>, %71, %cst_27 [1] : vector<16x16xf32> to vector<16xf32>
    %73 = vector.shape_cast %72 : vector<16xf32> to vector<16x1xf32>
    %74 = vector.broadcast %73 : vector<16x1xf32> to vector<16x16xf32>
    %75 = arith.subf %71, %74 : vector<16x16xf32>
    %76 = math.exp %75 : vector<16x16xf32>
    %cst_28 = arith.constant dense<0.000000e+00> : vector<16xf32>
    %77 = vector.multi_reduction <add>, %76, %cst_28 [1] : vector<16x16xf32> to vector<16xf32>
    %78 = vector.shape_cast %77 : vector<16xf32> to vector<16x1xf32>
    %79 = tpu.reciprocal %78 {approx = true} : vector<16x1xf32> -> vector<16x1xf32>
    %80 = vector.broadcast %79 : vector<16x1xf32> to vector<16x16xf32>
    %81 = arith.mulf %76, %80 : vector<16x16xf32>
    %82 = arith.addf %61, %81 : vector<16x16xf32>
    %83 = arith.truncf %81 : vector<16x16xf32> to vector<16x16xbf16>
    %cst_29 = arith.constant dense<0.000000e+00> : vector<16x16xf32>
    %84 = tpu.matmul %83, %69, %cst_29 {dimension_numbers = #tpu.dot_dimension_numbers<[1], [0], [0], [1], [0, 0, 1, 1], [], []>} : vector<16x16xbf16>, vector<16x16xbf16>, vector<16x16xf32> -> vector<16x16xf32>
    %85 = vector.extract_strided_slice %34 {offsets = [0, 32], sizes = [16, 16], strides = [1, 1]} : vector<16x128xf32> to vector<16x16xf32>
    %86 = arith.truncf %85 : vector<16x16xf32> to vector<16x16xbf16>
    %87 = vector.extract_strided_slice %35 {offsets = [0, 32], sizes = [16, 16], strides = [1, 1]} : vector<16x128xf32> to vector<16x16xf32>
    %88 = arith.truncf %87 : vector<16x16xf32> to vector<16x16xbf16>
    %89 = vector.extract_strided_slice %36 {offsets = [0, 32], sizes = [16, 16], strides = [1, 1]} : vector<16x128xf32> to vector<16x16xf32>
    %90 = arith.truncf %89 : vector<16x16xf32> to vector<16x16xbf16>
    %cst_30 = arith.constant dense<0.000000e+00> : vector<16x16xf32>
    %91 = tpu.matmul %86, %88, %cst_30 {dimension_numbers = #tpu.dot_dimension_numbers<[1], [1], [0], [0], [0, 0, 1, 0], [], []>} : vector<16x16xbf16>, vector<16x16xbf16>, vector<16x16xf32> -> vector<16x16xf32>
    %92 = arith.addf %91, %41 : vector<16x16xf32>
    %cst_31 = arith.constant dense<0xFF800000> : vector<16xf32>
    %93 = vector.multi_reduction <maximumf>, %92, %cst_31 [1] : vector<16x16xf32> to vector<16xf32>
    %94 = vector.shape_cast %93 : vector<16xf32> to vector<16x1xf32>
    %95 = vector.broadcast %94 : vector<16x1xf32> to vector<16x16xf32>
    %96 = arith.subf %92, %95 : vector<16x16xf32>
    %97 = math.exp %96 : vector<16x16xf32>
    %cst_32 = arith.constant dense<0.000000e+00> : vector<16xf32>
    %98 = vector.multi_reduction <add>, %97, %cst_32 [1] : vector<16x16xf32> to vector<16xf32>
    %99 = vector.shape_cast %98 : vector<16xf32> to vector<16x1xf32>
    %100 = tpu.reciprocal %99 {approx = true} : vector<16x1xf32> -> vector<16x1xf32>
    %101 = vector.broadcast %100 : vector<16x1xf32> to vector<16x16xf32>
    %102 = arith.mulf %97, %101 : vector<16x16xf32>
    %103 = arith.addf %82, %102 : vector<16x16xf32>
    %104 = arith.truncf %102 : vector<16x16xf32> to vector<16x16xbf16>
    %cst_33 = arith.constant dense<0.000000e+00> : vector<16x16xf32>
    %105 = tpu.matmul %104, %90, %cst_33 {dimension_numbers = #tpu.dot_dimension_numbers<[1], [0], [0], [1], [0, 0, 1, 1], [], []>} : vector<16x16xbf16>, vector<16x16xbf16>, vector<16x16xf32> -> vector<16x16xf32>
    %106 = vector.extract_strided_slice %34 {offsets = [0, 48], sizes = [16, 16], strides = [1, 1]} : vector<16x128xf32> to vector<16x16xf32>
    %107 = arith.truncf %106 : vector<16x16xf32> to vector<16x16xbf16>
    %108 = vector.extract_strided_slice %35 {offsets = [0, 48], sizes = [16, 16], strides = [1, 1]} : vector<16x128xf32> to vector<16x16xf32>
    %109 = arith.truncf %108 : vector<16x16xf32> to vector<16x16xbf16>
    %110 = vector.extract_strided_slice %36 {offsets = [0, 48], sizes = [16, 16], strides = [1, 1]} : vector<16x128xf32> to vector<16x16xf32>
    %111 = arith.truncf %110 : vector<16x16xf32> to vector<16x16xbf16>
    %cst_34 = arith.constant dense<0.000000e+00> : vector<16x16xf32>
    %112 = tpu.matmul %107, %109, %cst_34 {dimension_numbers = #tpu.dot_dimension_numbers<[1], [1], [0], [0], [0, 0, 1, 0], [], []>} : vector<16x16xbf16>, vector<16x16xbf16>, vector<16x16xf32> -> vector<16x16xf32>
    %113 = arith.addf %112, %41 : vector<16x16xf32>
    %cst_35 = arith.constant dense<0xFF800000> : vector<16xf32>
    %114 = vector.multi_reduction <maximumf>, %113, %cst_35 [1] : vector<16x16xf32> to vector<16xf32>
    %115 = vector.shape_cast %114 : vector<16xf32> to vector<16x1xf32>
    %116 = vector.broadcast %115 : vector<16x1xf32> to vector<16x16xf32>
    %117 = arith.subf %113, %116 : vector<16x16xf32>
    %118 = math.exp %117 : vector<16x16xf32>
    %cst_36 = arith.constant dense<0.000000e+00> : vector<16xf32>
    %119 = vector.multi_reduction <add>, %118, %cst_36 [1] : vector<16x16xf32> to vector<16xf32>
    %120 = vector.shape_cast %119 : vector<16xf32> to vector<16x1xf32>
    %121 = tpu.reciprocal %120 {approx = true} : vector<16x1xf32> -> vector<16x1xf32>
    %122 = vector.broadcast %121 : vector<16x1xf32> to vector<16x16xf32>
    %123 = arith.mulf %118, %122 : vector<16x16xf32>
    %124 = arith.addf %103, %123 : vector<16x16xf32>
    %125 = arith.truncf %123 : vector<16x16xf32> to vector<16x16xbf16>
    %cst_37 = arith.constant dense<0.000000e+00> : vector<16x16xf32>
    %126 = tpu.matmul %125, %111, %cst_37 {dimension_numbers = #tpu.dot_dimension_numbers<[1], [0], [0], [1], [0, 0, 1, 1], [], []>} : vector<16x16xbf16>, vector<16x16xbf16>, vector<16x16xf32> -> vector<16x16xf32>
    %127 = vector.extract_strided_slice %34 {offsets = [0, 64], sizes = [16, 16], strides = [1, 1]} : vector<16x128xf32> to vector<16x16xf32>
    %128 = arith.truncf %127 : vector<16x16xf32> to vector<16x16xbf16>
    %129 = vector.extract_strided_slice %35 {offsets = [0, 64], sizes = [16, 16], strides = [1, 1]} : vector<16x128xf32> to vector<16x16xf32>
    %130 = arith.truncf %129 : vector<16x16xf32> to vector<16x16xbf16>
    %131 = vector.extract_strided_slice %36 {offsets = [0, 64], sizes = [16, 16], strides = [1, 1]} : vector<16x128xf32> to vector<16x16xf32>
    %132 = arith.truncf %131 : vector<16x16xf32> to vector<16x16xbf16>
    %cst_38 = arith.constant dense<0.000000e+00> : vector<16x16xf32>
    %133 = tpu.matmul %128, %130, %cst_38 {dimension_numbers = #tpu.dot_dimension_numbers<[1], [1], [0], [0], [0, 0, 1, 0], [], []>} : vector<16x16xbf16>, vector<16x16xbf16>, vector<16x16xf32> -> vector<16x16xf32>
    %134 = arith.addf %133, %41 : vector<16x16xf32>
    %cst_39 = arith.constant dense<0xFF800000> : vector<16xf32>
    %135 = vector.multi_reduction <maximumf>, %134, %cst_39 [1] : vector<16x16xf32> to vector<16xf32>
    %136 = vector.shape_cast %135 : vector<16xf32> to vector<16x1xf32>
    %137 = vector.broadcast %136 : vector<16x1xf32> to vector<16x16xf32>
    %138 = arith.subf %134, %137 : vector<16x16xf32>
    %139 = math.exp %138 : vector<16x16xf32>
    %cst_40 = arith.constant dense<0.000000e+00> : vector<16xf32>
    %140 = vector.multi_reduction <add>, %139, %cst_40 [1] : vector<16x16xf32> to vector<16xf32>
    %141 = vector.shape_cast %140 : vector<16xf32> to vector<16x1xf32>
    %142 = tpu.reciprocal %141 {approx = true} : vector<16x1xf32> -> vector<16x1xf32>
    %143 = vector.broadcast %142 : vector<16x1xf32> to vector<16x16xf32>
    %144 = arith.mulf %139, %143 : vector<16x16xf32>
    %145 = arith.addf %124, %144 : vector<16x16xf32>
    %146 = arith.truncf %144 : vector<16x16xf32> to vector<16x16xbf16>
    %cst_41 = arith.constant dense<0.000000e+00> : vector<16x16xf32>
    %147 = tpu.matmul %146, %132, %cst_41 {dimension_numbers = #tpu.dot_dimension_numbers<[1], [0], [0], [1], [0, 0, 1, 1], [], []>} : vector<16x16xbf16>, vector<16x16xbf16>, vector<16x16xf32> -> vector<16x16xf32>
    %148 = vector.extract_strided_slice %34 {offsets = [0, 80], sizes = [16, 16], strides = [1, 1]} : vector<16x128xf32> to vector<16x16xf32>
    %149 = arith.truncf %148 : vector<16x16xf32> to vector<16x16xbf16>
    %150 = vector.extract_strided_slice %35 {offsets = [0, 80], sizes = [16, 16], strides = [1, 1]} : vector<16x128xf32> to vector<16x16xf32>
    %151 = arith.truncf %150 : vector<16x16xf32> to vector<16x16xbf16>
    %152 = vector.extract_strided_slice %36 {offsets = [0, 80], sizes = [16, 16], strides = [1, 1]} : vector<16x128xf32> to vector<16x16xf32>
    %153 = arith.truncf %152 : vector<16x16xf32> to vector<16x16xbf16>
    %cst_42 = arith.constant dense<0.000000e+00> : vector<16x16xf32>
    %154 = tpu.matmul %149, %151, %cst_42 {dimension_numbers = #tpu.dot_dimension_numbers<[1], [1], [0], [0], [0, 0, 1, 0], [], []>} : vector<16x16xbf16>, vector<16x16xbf16>, vector<16x16xf32> -> vector<16x16xf32>
    %155 = arith.addf %154, %41 : vector<16x16xf32>
    %cst_43 = arith.constant dense<0xFF800000> : vector<16xf32>
    %156 = vector.multi_reduction <maximumf>, %155, %cst_43 [1] : vector<16x16xf32> to vector<16xf32>
    %157 = vector.shape_cast %156 : vector<16xf32> to vector<16x1xf32>
    %158 = vector.broadcast %157 : vector<16x1xf32> to vector<16x16xf32>
    %159 = arith.subf %155, %158 : vector<16x16xf32>
    %160 = math.exp %159 : vector<16x16xf32>
    %cst_44 = arith.constant dense<0.000000e+00> : vector<16xf32>
    %161 = vector.multi_reduction <add>, %160, %cst_44 [1] : vector<16x16xf32> to vector<16xf32>
    %162 = vector.shape_cast %161 : vector<16xf32> to vector<16x1xf32>
    %163 = tpu.reciprocal %162 {approx = true} : vector<16x1xf32> -> vector<16x1xf32>
    %164 = vector.broadcast %163 : vector<16x1xf32> to vector<16x16xf32>
    %165 = arith.mulf %160, %164 : vector<16x16xf32>
    %166 = arith.addf %145, %165 : vector<16x16xf32>
    %167 = arith.truncf %165 : vector<16x16xf32> to vector<16x16xbf16>
    %cst_45 = arith.constant dense<0.000000e+00> : vector<16x16xf32>
    %168 = tpu.matmul %167, %153, %cst_45 {dimension_numbers = #tpu.dot_dimension_numbers<[1], [0], [0], [1], [0, 0, 1, 1], [], []>} : vector<16x16xbf16>, vector<16x16xbf16>, vector<16x16xf32> -> vector<16x16xf32>
    %169 = vector.extract_strided_slice %34 {offsets = [0, 96], sizes = [16, 16], strides = [1, 1]} : vector<16x128xf32> to vector<16x16xf32>
    %170 = arith.truncf %169 : vector<16x16xf32> to vector<16x16xbf16>
    %171 = vector.extract_strided_slice %35 {offsets = [0, 96], sizes = [16, 16], strides = [1, 1]} : vector<16x128xf32> to vector<16x16xf32>
    %172 = arith.truncf %171 : vector<16x16xf32> to vector<16x16xbf16>
    %173 = vector.extract_strided_slice %36 {offsets = [0, 96], sizes = [16, 16], strides = [1, 1]} : vector<16x128xf32> to vector<16x16xf32>
    %174 = arith.truncf %173 : vector<16x16xf32> to vector<16x16xbf16>
    %cst_46 = arith.constant dense<0.000000e+00> : vector<16x16xf32>
    %175 = tpu.matmul %170, %172, %cst_46 {dimension_numbers = #tpu.dot_dimension_numbers<[1], [1], [0], [0], [0, 0, 1, 0], [], []>} : vector<16x16xbf16>, vector<16x16xbf16>, vector<16x16xf32> -> vector<16x16xf32>
    %176 = arith.addf %175, %41 : vector<16x16xf32>
    %cst_47 = arith.constant dense<0xFF800000> : vector<16xf32>
    %177 = vector.multi_reduction <maximumf>, %176, %cst_47 [1] : vector<16x16xf32> to vector<16xf32>
    %178 = vector.shape_cast %177 : vector<16xf32> to vector<16x1xf32>
    %179 = vector.broadcast %178 : vector<16x1xf32> to vector<16x16xf32>
    %180 = arith.subf %176, %179 : vector<16x16xf32>
    %181 = math.exp %180 : vector<16x16xf32>
    %cst_48 = arith.constant dense<0.000000e+00> : vector<16xf32>
    %182 = vector.multi_reduction <add>, %181, %cst_48 [1] : vector<16x16xf32> to vector<16xf32>
    %183 = vector.shape_cast %182 : vector<16xf32> to vector<16x1xf32>
    %184 = tpu.reciprocal %183 {approx = true} : vector<16x1xf32> -> vector<16x1xf32>
    %185 = vector.broadcast %184 : vector<16x1xf32> to vector<16x16xf32>
    %186 = arith.mulf %181, %185 : vector<16x16xf32>
    %187 = arith.addf %166, %186 : vector<16x16xf32>
    %188 = arith.truncf %186 : vector<16x16xf32> to vector<16x16xbf16>
    %cst_49 = arith.constant dense<0.000000e+00> : vector<16x16xf32>
    %189 = tpu.matmul %188, %174, %cst_49 {dimension_numbers = #tpu.dot_dimension_numbers<[1], [0], [0], [1], [0, 0, 1, 1], [], []>} : vector<16x16xbf16>, vector<16x16xbf16>, vector<16x16xf32> -> vector<16x16xf32>
    %190 = vector.extract_strided_slice %34 {offsets = [0, 112], sizes = [16, 16], strides = [1, 1]} : vector<16x128xf32> to vector<16x16xf32>
    %191 = arith.truncf %190 : vector<16x16xf32> to vector<16x16xbf16>
    %192 = vector.extract_strided_slice %35 {offsets = [0, 112], sizes = [16, 16], strides = [1, 1]} : vector<16x128xf32> to vector<16x16xf32>
    %193 = arith.truncf %192 : vector<16x16xf32> to vector<16x16xbf16>
    %194 = vector.extract_strided_slice %36 {offsets = [0, 112], sizes = [16, 16], strides = [1, 1]} : vector<16x128xf32> to vector<16x16xf32>
    %195 = arith.truncf %194 : vector<16x16xf32> to vector<16x16xbf16>
    %cst_50 = arith.constant dense<0.000000e+00> : vector<16x16xf32>
    %196 = tpu.matmul %191, %193, %cst_50 {dimension_numbers = #tpu.dot_dimension_numbers<[1], [1], [0], [0], [0, 0, 1, 0], [], []>} : vector<16x16xbf16>, vector<16x16xbf16>, vector<16x16xf32> -> vector<16x16xf32>
    %197 = arith.addf %196, %41 : vector<16x16xf32>
    %cst_51 = arith.constant dense<0xFF800000> : vector<16xf32>
    %198 = vector.multi_reduction <maximumf>, %197, %cst_51 [1] : vector<16x16xf32> to vector<16xf32>
    %199 = vector.shape_cast %198 : vector<16xf32> to vector<16x1xf32>
    %200 = vector.broadcast %199 : vector<16x1xf32> to vector<16x16xf32>
    %201 = arith.subf %197, %200 : vector<16x16xf32>
    %202 = math.exp %201 : vector<16x16xf32>
    %cst_52 = arith.constant dense<0.000000e+00> : vector<16xf32>
    %203 = vector.multi_reduction <add>, %202, %cst_52 [1] : vector<16x16xf32> to vector<16xf32>
    %204 = vector.shape_cast %203 : vector<16xf32> to vector<16x1xf32>
    %205 = tpu.reciprocal %204 {approx = true} : vector<16x1xf32> -> vector<16x1xf32>
    %206 = vector.broadcast %205 : vector<16x1xf32> to vector<16x16xf32>
    %207 = arith.mulf %202, %206 : vector<16x16xf32>
    %208 = arith.addf %187, %207 : vector<16x16xf32>
    %209 = arith.truncf %207 : vector<16x16xf32> to vector<16x16xbf16>
    %cst_53 = arith.constant dense<0.000000e+00> : vector<16x16xf32>
    %210 = tpu.matmul %209, %195, %cst_53 {dimension_numbers = #tpu.dot_dimension_numbers<[1], [0], [0], [1], [0, 0, 1, 1], [], []>} : vector<16x16xbf16>, vector<16x16xbf16>, vector<16x16xf32> -> vector<16x16xf32>
    %211 = tpu.concatenate %63, %84, %105, %126, %147, %168, %189, %210 in 1 : vector<16x16xf32>, vector<16x16xf32>, vector<16x16xf32>, vector<16x16xf32>, vector<16x16xf32>, vector<16x16xf32>, vector<16x16xf32>, vector<16x16xf32> -> vector<16x128xf32>
    %cst_54 = arith.constant 1.250000e-01 : f32
    %212 = vector.broadcast %cst_54 : f32 to vector<16x16xf32>
    %213 = arith.mulf %208, %212 : vector<16x16xf32>
    %214 = arith.truncf %211 : vector<16x128xf32> to vector<16x128xbf16>
    %c0_55 = arith.constant 0 : index
    %c0_56 = arith.constant 0 : index
    %215 = vector.load %arg6[%c0_55, %c0_56] : memref<128x128xbf16, #tpu.memory_space<vmem>>, vector<128x128xbf16>
    %cst_57 = arith.constant dense<0.000000e+00> : vector<16x128xf32>
    %216 = tpu.matmul %214, %215, %cst_57 {dimension_numbers = #tpu.dot_dimension_numbers<[1], [0], [0], [1], [0, 0, 1, 1], [], []>} : vector<16x128xbf16>, vector<128x128xbf16>, vector<16x128xf32> -> vector<16x128xf32>
    %c0_58 = arith.constant 0 : index
    %c0_59 = arith.constant 0 : index
    %217 = vector.load %arg7[%c0_58, %c0_59] : memref<1x128xf32, #tpu.memory_space<vmem>>, vector<1x128xf32>
    %218 = vector.broadcast %217 : vector<1x128xf32> to vector<16x128xf32>
    %219 = arith.addf %216, %218 : vector<16x128xf32>
    %220 = arith.addf %1, %219 : vector<16x128xf32>
    %c0_60 = arith.constant 0 : index
    %c0_61 = arith.constant 0 : index
    %c0_62 = arith.constant 0 : index
    %221 = vector.load %arg10[%c0_60, %c0_61, %c0_62] : memref<1x16x128xf32, #tpu.memory_space<vmem>>, vector<1x16x128xf32>
    %222 = vector.shape_cast %221 : vector<1x16x128xf32> to vector<16x128xf32>
    %223 = vector.shape_cast %220 : vector<16x128xf32> to vector<1x16x128xf32>
    tpu.vector_store %arg10[%c0_60, %c0_61, %c0_62], %223 {strides = array<i32>} : memref<1x16x128xf32, #tpu.memory_space<vmem>>, vector<1x16x128xf32>,
    %c0_63 = arith.constant 0 : index
    %c0_64 = arith.constant 0 : index
    %c0_65 = arith.constant 0 : index
    %224 = vector.load %arg11[%c0_63, %c0_64, %c0_65] : memref<1x16x16xf32, #tpu.memory_space<vmem>>, vector<1x16x16xf32>
    %225 = vector.shape_cast %224 : vector<1x16x16xf32> to vector<16x16xf32>
    %226 = vector.shape_cast %213 : vector<16x16xf32> to vector<1x16x16xf32>
    tpu.vector_store %arg11[%c0_63, %c0_64, %c0_65], %226 {strides = array<i32>} : memref<1x16x16xf32, #tpu.memory_space<vmem>>, vector<1x16x16xf32>,
    return
  }
  func.func @transform_0(%arg0: i32) -> (i32, i32, i32) {
    %c0_i32 = arith.constant 0 : i32
    %c0_i32_0 = arith.constant 0 : i32
    %c0_i32_1 = arith.constant 0 : i32
    return %arg0, %c0_i32, %c0_i32_0 : i32, i32, i32
  }
  func.func @transform_1(%arg0: i32) -> (i32, i32) {
    %c0_i32 = arith.constant 0 : i32
    %c0_i32_0 = arith.constant 0 : i32
    %c0_i32_1 = arith.constant 0 : i32
    return %c0_i32, %c0_i32_0 : i32, i32
  }
  func.func @transform_2(%arg0: i32) -> (i32, i32) {
    %c0_i32 = arith.constant 0 : i32
    %c0_i32_0 = arith.constant 0 : i32
    %c0_i32_1 = arith.constant 0 : i32
    return %c0_i32, %c0_i32_0 : i32, i32
  }
  func.func @transform_3(%arg0: i32) -> (i32, i32) {
    %c0_i32 = arith.constant 0 : i32
    %c0_i32_0 = arith.constant 0 : i32
    %c0_i32_1 = arith.constant 0 : i32
    return %c0_i32, %c0_i32_0 : i32, i32
  }
  func.func @transform_4(%arg0: i32) -> (i32, i32) {
    %c0_i32 = arith.constant 0 : i32
    %c0_i32_0 = arith.constant 0 : i32
    %c0_i32_1 = arith.constant 0 : i32
    return %c0_i32, %c0_i32_0 : i32, i32
  }
  func.func @transform_5(%arg0: i32) -> (i32, i32) {
    %c0_i32 = arith.constant 0 : i32
    %c0_i32_0 = arith.constant 0 : i32
    %c0_i32_1 = arith.constant 0 : i32
    return %c0_i32, %c0_i32_0 : i32, i32
  }
  func.func @transform_6(%arg0: i32) -> (i32, i32) {
    %c0_i32 = arith.constant 0 : i32
    %c0_i32_0 = arith.constant 0 : i32
    %c0_i32_1 = arith.constant 0 : i32
    return %c0_i32, %c0_i32_0 : i32, i32
  }
  func.func @transform_7(%arg0: i32) -> (i32, i32) {
    %c0_i32 = arith.constant 0 : i32
    %c0_i32_0 = arith.constant 0 : i32
    %c0_i32_1 = arith.constant 0 : i32
    return %c0_i32, %c0_i32_0 : i32, i32
  }
  func.func @transform_8(%arg0: i32) -> (i32, i32, i32) {
    %c0_i32 = arith.constant 0 : i32
    %c0_i32_0 = arith.constant 0 : i32
    %c0_i32_1 = arith.constant 0 : i32
    return %arg0, %c0_i32, %c0_i32_0 : i32, i32, i32
  }
  func.func @transform_9(%arg0: i32) -> (i32, i32, i32) {
    %c0_i32 = arith.constant 0 : i32
    %c0_i32_0 = arith.constant 0 : i32
    %c0_i32_1 = arith.constant 0 : i32
    return %arg0, %c0_i32, %c0_i32_0 : i32, i32, i32
  }
  func.func @transform_10(%arg0: i32) -> (i32, i32, i32) {
    %c0_i32 = arith.constant 0 : i32
    %c0_i32_0 = arith.constant 0 : i32
    %c0_i32_1 = arith.constant 0 : i32
    return %arg0, %c0_i32, %c0_i32_0 : i32, i32, i32
  }
}

</mosaic_0001>

<llo_original>
// kernel: tpu_custom_call.1
$region0: #{tpu_custom_call.1}
  #allocation0 [shape = 'u32[]', space=smem, size = 0x4, offset = 0x4, fixed_abs, tag = 'smem constant byte address 0x4 - core index']
  #allocation1 [shape = 'u32[72,128]{1,0:T(1,128)}', space=vmem, size = 0x9000, scoped, tag = 'internal scratch']
  %s0 = inlined_call_operand.hbm [shape: f32[2,16,128], index: 0, kind: input, shape index: {}]
  %s1 = inlined_call_operand.hbm [shape: f32[1,128], index: 1, kind: input, shape index: {}]
  %s2 = inlined_call_operand.hbm [shape: f32[1,128], index: 2, kind: input, shape index: {}]
  %s3 = inlined_call_operand.hbm [shape: bf16[128,384], index: 3, kind: input, shape index: {}]
  %s4 = inlined_call_operand.vmem [shape: f32[1,384], index: 4, kind: input, shape index: {}]
  %s5 = inlined_call_operand.hbm [shape: bf16[128,128], index: 5, kind: input, shape index: {}]
  %s6 = inlined_call_operand.hbm [shape: f32[1,128], index: 6, kind: input, shape index: {}]
  %s7 = inlined_call_operand.hbm [shape: f32[16,16], index: 7, kind: input, shape index: {}]
  %s8 = inlined_call_operand.vmem [shape: f32[2,1,16], index: 8, kind: input, shape index: {}]
  %s9 = inlined_call_operand.hbm [shape: f32[2,16,128], index: 9, kind: output, shape index: {0}]
  %s10 = inlined_call_operand.hbm [shape: f32[2,16,16], index: 10, kind: output, shape index: {1}]
  %11 = xla_tuple %s9, %s10
  %s12 = sld [smem:[#allocation0]]
  $region105: #{tpu_custom_call.1} parent=0
    _
  %s14 = ssub.s32 1, %s12
  %s15 = scalar_select 0, %s14, %s12
  $region1: #{tpu_custom_call.1} parent=0
    #allocation2 [shape = 'u8[16384]{0}', space=vmem, size = 0x4000, scoped, tag = 'input window, operand 0']
    #allocation3 [shape = 's32[2]{0}', space=sflag, size = 0x8, scoped, tag = 'scoped memory for tpu_custom_call.1']
    #allocation4 [shape = 's32[2]{0}', space=sflag, size = 0x8, scoped, tag = 'scoped memory for tpu_custom_call.1']
    #allocation5 [shape = 'u8[512]{0}', space=vmem, size = 0x400, scoped, tag = 'input window, operand 1, single buffered']
    #allocation6 [shape = 's32[1]{0}', space=sflag, size = 0x4, scoped, tag = 'scoped memory for tpu_custom_call.1']
    #allocation7 [shape = 'u8[512]{0}', space=vmem, size = 0x400, scoped, tag = 'input window, operand 2, single buffered']
    #allocation8 [shape = 'u8[98304]{0}', space=vmem, size = 0x18000, scoped, tag = 'input window, operand 3, single buffered']
    #allocation9 [shape = 's32[1]{0}', space=sflag, size = 0x4, scoped, tag = 'scoped memory for tpu_custom_call.1']
    #allocation10 [shape = 'u8[32768]{0}', space=vmem, size = 0x8000, scoped, tag = 'input window, operand 5, single buffered']
    #allocation11 [shape = 'u8[512]{0}', space=vmem, size = 0x400, scoped, tag = 'input window, operand 6, single buffered']
    #allocation12 [shape = 's32[1]{0}', space=sflag, size = 0x4, scoped, tag = 'scoped memory for tpu_custom_call.1']
    #allocation13 [shape = 'u8[8192]{0}', space=vmem, size = 0x2000, scoped, tag = 'input window, operand 7, single buffered']
    #allocation14 [shape = 'u8[16384]{0}', space=vmem, size = 0x4000, scoped, tag = 'output window, operand 0']
    #allocation15 [shape = 'u8[16384]{0}', space=vmem, size = 0x4000, scoped, tag = 'output window, operand 1']
    #allocation16 [shape = 's32[2]{0}', space=sflag, size = 0x8, scoped, tag = 'scoped memory for tpu_custom_call.1']
    %16 = vsyncpa [#allocation3], 0
    %s17 = scalar_lea.sflag [#allocation3], 1
    %18 = vsyncpa %s17, 0
    %19 = vsyncpa [#allocation6], 0
    %20 = vsyncpa [#allocation9], 0
    %21 = vsyncpa [#allocation12], 0
    %22 = vsyncpa [#allocation4], 0
    %s23 = scalar_lea.sflag [#allocation4], 1
    %24 = vsyncpa %s23, 0
    %25 = vsyncpa [#allocation16], 0
    %s26 = scalar_lea.sflag [#allocation16], 1
    %27 = vsyncpa %s26, 0
    loop: start=0, step=1, limit=4
    $region2: #{tpu_custom_call.1} parent=1 // loop_pre_header
      _
    $region3: #{tpu_custom_call.1} parent=1 // loop_header
      %s29 = sphi 0, %s33
      %p30 = scmp.ge.s32.totalorder %s29, 4
      %s39 = sphi 0, %s41
      %s42 = sphi 0, %s39
      %s43 = sphi 0, %s42
      %s59 = sphi 0, %s43
      %s63 = sphi 0, %s63
      %s65 = sphi 0, %s63
      %s66 = sphi 0, %s65
      %s80 = sphi 0, %s66
      %s84 = sphi 0, %s84
      %s86 = sphi 0, %s84
      %s87 = sphi 0, %s86
      %s101 = sphi 0, %s87
      %s105 = sphi 0, %s105
      %s107 = sphi 0, %s105
      %s108 = sphi 0, %s107
      %s122 = sphi 0, %s108
      %s126 = sphi 0, %s126
      %s128 = sphi 0, %s126
      %s129 = sphi 0, %s128
      %s143 = sphi 0, %s129
      %s147 = sphi 0, %s147
      %s149 = sphi 0, %s147
      %s150 = sphi 0, %s149
      %s164 = sphi 0, %s150
      %s168 = sphi 0, %s168
      %s170 = sphi 0, %s168
      %s171 = sphi 0, %s170
      %s185 = sphi 0, %s171
      %s189 = sphi 0, %s189
      %s191 = sphi 0, %s189
      %s192 = sphi 0, %s191
      %s206 = sphi 0, %s192
      %s212 = sphi 0, %s214
      %s215 = sphi 0, %s212
      %s216 = sphi 0, %s215
      %s232 = sphi 0, %s216
      %s238 = sphi 0, %s240
      %s241 = sphi 0, %s238
      %s242 = sphi 0, %s241
      %s258 = sphi 0, %s242
      %s264 = sphi 0, %s266
      %s267 = sphi 0, %s264
      %s268 = sphi 0, %s267
      %s284 = sphi 0, %s268
    $region4: #{tpu_custom_call.1} parent=1 // loop_header_branch
      %32 = sbr.rel (%p30) target = $region8
    $region5: #{tpu_custom_call.1} parent=1 // loop_body
      %s34 = ssub.s32 %s29, 1
      %s35 = ssub.s32 %s29, 2
      %s36 = sadd.s32 %s29, 1
      %s37 = ssub.s32 %s29, %s36
      %p38 = scmp.eq.s32.totalorder %s37, 0
      %s40 = sadd.s32 %s39, 1
      %s41 = scalar_select %p38, %s39, %s40
      %p44 = pneg %p38
      %p45 = scmp.eq.s32.totalorder %s29, 1
      %p46 = por %p44, %p45
      %p47 = scmp.ne.s32.totalorder %s39, %s42
      %p48 = scmp.eq.s32.totalorder %s29, 0
      %p49 = por %p47, %p48
      %p50 = scmp.ne.s32.totalorder %s39, %s42
      %p51 = scmp.eq.s32.totalorder %s34, 1
      %p52 = por %p50, %p51
      %p53 = scmp.ne.s32.totalorder %s42, %s43
      %p54 = scmp.eq.s32.totalorder %s34, 0
      %p55 = por %p53, %p54
      %p56 = scmp.ne.s32.totalorder %s42, %s43
      %p57 = scmp.eq.s32.totalorder %s35, 1
      %p58 = por %p56, %p57
      %p60 = scmp.ne.s32.totalorder %s43, %s59
      %p61 = scmp.eq.s32.totalorder %s35, 0
      %p62 = por %p60, %p61
      %s64 = sadd.s32 %s63, 1
      %p67 = scmp.eq.s32.totalorder %s29, 1
      %p68 = scmp.ne.s32.totalorder %s63, %s65
      %p69 = scmp.eq.s32.totalorder %s29, 0
      %p70 = por %p68, %p69
      %p71 = scmp.ne.s32.totalorder %s63, %s65
      %p72 = scmp.eq.s32.totalorder %s34, 1
      %p73 = por %p71, %p72
      %p74 = scmp.ne.s32.totalorder %s65, %s66
      %p75 = scmp.eq.s32.totalorder %s34, 0
      %p76 = por %p74, %p75
      %p77 = scmp.ne.s32.totalorder %s65, %s66
      %p78 = scmp.eq.s32.totalorder %s35, 1
      %p79 = por %p77, %p78
      %p81 = scmp.ne.s32.totalorder %s66, %s80
      %p82 = scmp.eq.s32.totalorder %s35, 0
      %p83 = por %p81, %p82
      %s85 = sadd.s32 %s84, 1
      %p88 = scmp.eq.s32.totalorder %s29, 1
      %p89 = scmp.ne.s32.totalorder %s84, %s86
      %p90 = scmp.eq.s32.totalorder %s29, 0
      %p91 = por %p89, %p90
      %p92 = scmp.ne.s32.totalorder %s84, %s86
      %p93 = scmp.eq.s32.totalorder %s34, 1
      %p94 = por %p92, %p93
      %p95 = scmp.ne.s32.totalorder %s86, %s87
      %p96 = scmp.eq.s32.totalorder %s34, 0
      %p97 = por %p95, %p96
      %p98 = scmp.ne.s32.totalorder %s86, %s87
      %p99 = scmp.eq.s32.totalorder %s35, 1
      %p100 = por %p98, %p99
      %p102 = scmp.ne.s32.totalorder %s87, %s101
      %p103 = scmp.eq.s32.totalorder %s35, 0
      %p104 = por %p102, %p103
      %s106 = sadd.s32 %s105, 1
      %p109 = scmp.eq.s32.totalorder %s29, 1
      %p110 = scmp.ne.s32.totalorder %s105, %s107
      %p111 = scmp.eq.s32.totalorder %s29, 0
      %p112 = por %p110, %p111
      %p113 = scmp.ne.s32.totalorder %s105, %s107
      %p114 = scmp.eq.s32.totalorder %s34, 1
      %p115 = por %p113, %p114
      %p116 = scmp.ne.s32.totalorder %s107, %s108
      %p117 = scmp.eq.s32.totalorder %s34, 0
      %p118 = por %p116, %p117
      %p119 = scmp.ne.s32.totalorder %s107, %s108
      %p120 = scmp.eq.s32.totalorder %s35, 1
      %p121 = por %p119, %p120
      %p123 = scmp.ne.s32.totalorder %s108, %s122
      %p124 = scmp.eq.s32.totalorder %s35, 0
      %p125 = por %p123, %p124
      %s127 = sadd.s32 %s126, 1
      %p130 = scmp.eq.s32.totalorder %s29, 1
      %p131 = scmp.ne.s32.totalorder %s126, %s128
      %p132 = scmp.eq.s32.totalorder %s29, 0
      %p133 = por %p131, %p132
      %p134 = scmp.ne.s32.totalorder %s126, %s128
      %p135 = scmp.eq.s32.totalorder %s34, 1
      %p136 = por %p134, %p135
      %p137 = scmp.ne.s32.totalorder %s128, %s129
      %p138 = scmp.eq.s32.totalorder %s34, 0
      %p139 = por %p137, %p138
      %p140 = scmp.ne.s32.totalorder %s128, %s129
      %p141 = scmp.eq.s32.totalorder %s35, 1
      %p142 = por %p140, %p141
      %p144 = scmp.ne.s32.totalorder %s129, %s143
      %p145 = scmp.eq.s32.totalorder %s35, 0
      %p146 = por %p144, %p145
      %s148 = sadd.s32 %s147, 1
      %p151 = scmp.eq.s32.totalorder %s29, 1
      %p152 = scmp.ne.s32.totalorder %s147, %s149
      %p153 = scmp.eq.s32.totalorder %s29, 0
      %p154 = por %p152, %p153
      %p155 = scmp.ne.s32.totalorder %s147, %s149
      %p156 = scmp.eq.s32.totalorder %s34, 1
      %p157 = por %p155, %p156
      %p158 = scmp.ne.s32.totalorder %s149, %s150
      %p159 = scmp.eq.s32.totalorder %s34, 0
      %p160 = por %p158, %p159
      %p161 = scmp.ne.s32.totalorder %s149, %s150
      %p162 = scmp.eq.s32.totalorder %s35, 1
      %p163 = por %p161, %p162
      %p165 = scmp.ne.s32.totalorder %s150, %s164
      %p166 = scmp.eq.s32.totalorder %s35, 0
      %p167 = por %p165, %p166
      %s169 = sadd.s32 %s168, 1
      %p172 = scmp.eq.s32.totalorder %s29, 1
      %p173 = scmp.ne.s32.totalorder %s168, %s170
      %p174 = scmp.eq.s32.totalorder %s29, 0
      %p175 = por %p173, %p174
      %p176 = scmp.ne.s32.totalorder %s168, %s170
      %p177 = scmp.eq.s32.totalorder %s34, 1
      %p178 = por %p176, %p177
      %p179 = scmp.ne.s32.totalorder %s170, %s171
      %p180 = scmp.eq.s32.totalorder %s34, 0
      %p181 = por %p179, %p180
      %p182 = scmp.ne.s32.totalorder %s170, %s171
      %p183 = scmp.eq.s32.totalorder %s35, 1
      %p184 = por %p182, %p183
      %p186 = scmp.ne.s32.totalorder %s171, %s185
      %p187 = scmp.eq.s32.totalorder %s35, 0
      %p188 = por %p186, %p187
      %s190 = sadd.s32 %s189, 1
      %p193 = scmp.eq.s32.totalorder %s29, 1
      %p194 = scmp.ne.s32.totalorder %s189, %s191
      %p195 = scmp.eq.s32.totalorder %s29, 0
      %p196 = por %p194, %p195
      %p197 = scmp.ne.s32.totalorder %s189, %s191
      %p198 = scmp.eq.s32.totalorder %s34, 1
      %p199 = por %p197, %p198
      %p200 = scmp.ne.s32.totalorder %s191, %s192
      %p201 = scmp.eq.s32.totalorder %s34, 0
      %p202 = por %p200, %p201
      %p203 = scmp.ne.s32.totalorder %s191, %s192
      %p204 = scmp.eq.s32.totalorder %s35, 1
      %p205 = por %p203, %p204
      %p207 = scmp.ne.s32.totalorder %s192, %s206
      %p208 = scmp.eq.s32.totalorder %s35, 0
      %p209 = por %p207, %p208
      %s210 = ssub.s32 %s29, %s36
      %p211 = scmp.eq.s32.totalorder %s210, 0
      %s213 = sadd.s32 %s212, 1
      %s214 = scalar_select %p211, %s212, %s213
      %p217 = pneg %p211
      %p218 = scmp.eq.s32.totalorder %s29, 1
      %p219 = por %p217, %p218
      %p220 = scmp.ne.s32.totalorder %s212, %s215
      %p221 = scmp.eq.s32.totalorder %s29, 0
      %p222 = por %p220, %p221
      %p223 = scmp.ne.s32.totalorder %s212, %s215
      %p224 = scmp.eq.s32.totalorder %s34, 1
      %p225 = por %p223, %p224
      %p226 = scmp.ne.s32.totalorder %s215, %s216
      %p227 = scmp.eq.s32.totalorder %s34, 0
      %p228 = por %p226, %p227
      %p229 = scmp.ne.s32.totalorder %s215, %s216
      %p230 = scmp.eq.s32.totalorder %s35, 1
      %p231 = por %p229, %p230
      %p233 = scmp.ne.s32.totalorder %s216, %s232
      %p234 = scmp.eq.s32.totalorder %s35, 0
      %p235 = por %p233, %p234
      %s236 = ssub.s32 %s29, %s36
      %p237 = scmp.eq.s32.totalorder %s236, 0
      %s239 = sadd.s32 %s238, 1
      %s240 = scalar_select %p237, %s238, %s239
      %p243 = pneg %p237
      %p244 = scmp.eq.s32.totalorder %s29, 1
      %p245 = por %p243, %p244
      %p246 = scmp.ne.s32.totalorder %s238, %s241
      %p247 = scmp.eq.s32.totalorder %s29, 0
      %p248 = por %p246, %p247
      %p249 = scmp.ne.s32.totalorder %s238, %s241
      %p250 = scmp.eq.s32.totalorder %s34, 1
      %p251 = por %p249, %p250
      %p252 = scmp.ne.s32.totalorder %s241, %s242
      %p253 = scmp.eq.s32.totalorder %s34, 0
      %p254 = por %p252, %p253
      %p255 = scmp.ne.s32.totalorder %s241, %s242
      %p256 = scmp.eq.s32.totalorder %s35, 1
      %p257 = por %p255, %p256
      %p259 = scmp.ne.s32.totalorder %s242, %s258
      %p260 = scmp.eq.s32.totalorder %s35, 0
      %p261 = por %p259, %p260
      %s262 = ssub.s32 %s29, %s36
      %p263 = scmp.eq.s32.totalorder %s262, 0
      %s265 = sadd.s32 %s264, 1
      %s266 = scalar_select %p263, %s264, %s265
      %p269 = pneg %p263
      %p270 = scmp.eq.s32.totalorder %s29, 1
      %p271 = por %p269, %p270
      %p272 = scmp.ne.s32.totalorder %s264, %s267
      %p273 = scmp.eq.s32.totalorder %s29, 0
      %p274 = por %p272, %p273
      %p275 = scmp.ne.s32.totalorder %s264, %s267
      %p276 = scmp.eq.s32.totalorder %s34, 1
      %p277 = por %p275, %p276
      %p278 = scmp.ne.s32.totalorder %s267, %s268
      %p279 = scmp.eq.s32.totalorder %s34, 0
      %p280 = por %p278, %p279
      %p281 = scmp.ne.s32.totalorder %s267, %s268
      %p282 = scmp.eq.s32.totalorder %s35, 1
      %p283 = por %p281, %p282
      %p285 = scmp.ne.s32.totalorder %s268, %s284
      %p286 = scmp.eq.s32.totalorder %s35, 0
      %p287 = por %p285, %p286
      %p288 = scmp.le.s32.totalorder 1, %s29
      %p289 = scmp.lt.s32.totalorder %s29, 3
      %p290 = pnand %p288, %p289
      %p291 = pneg %p290
      // Predicated region
      $region9: #{tpu_custom_call.1} parent=5 // pred_check
        _
      $region10: #{tpu_custom_call.1} parent=5 // pred_check_branch
        %293 = sbr.rel (%p290) target = $region12
      $region11: #{tpu_custom_call.1} parent=5 // pred_region
        %s294 = ssub.s32 %s29, 1
        // Predicated region
        $region13: #{tpu_custom_call.1} parent=11 // pred_check
          %p295 = pneg %p76
        $region14: #{tpu_custom_call.1} parent=11 // pred_check_branch
          %297 = sbr.rel (%p295) target = $region16
        $region15: #{tpu_custom_call.1} parent=11 // pred_region
          %299 = vsyncadd [#allocation6], 0
          %s301 = sshll.u32 %s1, 4
          %s302 = int_to_ptr.hbm [resolvable:$true] %s301
          %s303 = sshll.u32 [#allocation5], 4
          %s304 = int_to_ptr.vmem [resolvable:$true] %s303
          %306 = dma.hbm_to_vmem [thread:$0]  %s302, 16, %s304, [#allocation6]
        $region16: #{tpu_custom_call.1} parent=11 // pred_fallthru
          _
        // Predicated region
        $region17: #{tpu_custom_call.1} parent=11 // pred_check
          %p307 = pneg %p97
        $region18: #{tpu_custom_call.1} parent=11 // pred_check_branch
          %309 = sbr.rel (%p307) target = $region20
        $region19: #{tpu_custom_call.1} parent=11 // pred_region
          %311 = vsyncadd [#allocation6], 0
          %s313 = sshll.u32 %s2, 4
          %s314 = int_to_ptr.hbm [resolvable:$true] %s313
          %s315 = sshll.u32 [#allocation7], 4
          %s316 = int_to_ptr.vmem [resolvable:$true] %s315
          %318 = dma.hbm_to_vmem [thread:$0]  %s314, 16, %s316, [#allocation6]
        $region20: #{tpu_custom_call.1} parent=11 // pred_fallthru
          _
        // Predicated region
        $region21: #{tpu_custom_call.1} parent=11 // pred_check
          %p319 = pneg %p118
        $region22: #{tpu_custom_call.1} parent=11 // pred_check_branch
          %321 = sbr.rel (%p319) target = $region24
        $region23: #{tpu_custom_call.1} parent=11 // pred_region
          %323 = vsyncadd [#allocation9], 0
          %s324 = sshll.u32 %s3, 4
          %s325 = int_to_ptr.hbm [resolvable:$true] %s324
          %s326 = sshll.u32 [#allocation8], 4
          %s327 = int_to_ptr.vmem [resolvable:$true] %s326
          %332 = dma.hbm_to_vmem [thread:$0]  %s325, 3072, %s327, [#allocation9], 192, 192, 12
        $region24: #{tpu_custom_call.1} parent=11 // pred_fallthru
          _
        // Predicated region
        $region25: #{tpu_custom_call.1} parent=11 // pred_check
          %p333 = pneg %p139
        $region26: #{tpu_custom_call.1} parent=11 // pred_check_branch
          %335 = sbr.rel (%p333) target = $region28
        $region27: #{tpu_custom_call.1} parent=11 // pred_region
          _
        $region28: #{tpu_custom_call.1} parent=11 // pred_fallthru
          _
        // Predicated region
        $region29: #{tpu_custom_call.1} parent=11 // pred_check
          %p336 = pneg %p160
        $region30: #{tpu_custom_call.1} parent=11 // pred_check_branch
          %338 = sbr.rel (%p336) target = $region32
        $region31: #{tpu_custom_call.1} parent=11 // pred_region
          %340 = vsyncadd [#allocation9], 0
          %s341 = sshll.u32 %s5, 4
          %s342 = int_to_ptr.hbm [resolvable:$true] %s341
          %s343 = sshll.u32 [#allocation10], 4
          %s344 = int_to_ptr.vmem [resolvable:$true] %s343
          %349 = dma.hbm_to_vmem [thread:$0]  %s342, 1024, %s344, [#allocation9], 64, 64, 4
        $region32: #{tpu_custom_call.1} parent=11 // pred_fallthru
          _
        // Predicated region
        $region33: #{tpu_custom_call.1} parent=11 // pred_check
          %p350 = pneg %p181
        $region34: #{tpu_custom_call.1} parent=11 // pred_check_branch
          %352 = sbr.rel (%p350) target = $region36
        $region35: #{tpu_custom_call.1} parent=11 // pred_region
          %354 = vsyncadd [#allocation12], 0
          %s356 = sshll.u32 %s6, 4
          %s357 = int_to_ptr.hbm [resolvable:$true] %s356
          %s358 = sshll.u32 [#allocation11], 4
          %s359 = int_to_ptr.vmem [resolvable:$true] %s358
          %361 = dma.hbm_to_vmem [thread:$0]  %s357, 16, %s359, [#allocation12]
        $region36: #{tpu_custom_call.1} parent=11 // pred_fallthru
          _
        // Predicated region
        $region37: #{tpu_custom_call.1} parent=11 // pred_check
          %p362 = pneg %p202
        $region38: #{tpu_custom_call.1} parent=11 // pred_check_branch
          %364 = sbr.rel (%p362) target = $region40
        $region39: #{tpu_custom_call.1} parent=11 // pred_region
          %366 = vsyncadd [#allocation12], 0
          %s367 = sshll.u32 %s7, 4
          %s368 = int_to_ptr.hbm [resolvable:$true] %s367
          %s369 = sshll.u32 [#allocation13], 4
          %s370 = int_to_ptr.vmem [resolvable:$true] %s369
          %375 = dma.hbm_to_vmem [thread:$0]  %s368, 256, %s370, [#allocation12], 128, 128, 8
        $region40: #{tpu_custom_call.1} parent=11 // pred_fallthru
          _
      $region12: #{tpu_custom_call.1} parent=5 // pred_fallthru
        _
      %p376 = scmp.lt.s32.totalorder %s29, 2
      // Predicated region
      $region41: #{tpu_custom_call.1} parent=5 // pred_check
        %p377 = pneg %p376
      $region42: #{tpu_custom_call.1} parent=5 // pred_check_branch
        %379 = sbr.rel (%p377) target = $region44
      $region43: #{tpu_custom_call.1} parent=5 // pred_region
        // Predicated region
        $region45: #{tpu_custom_call.1} parent=43 // pred_check
          %p380 = pneg %p49
        $region46: #{tpu_custom_call.1} parent=43 // pred_check_branch
          %382 = sbr.rel (%p380) target = $region48
        $region47: #{tpu_custom_call.1} parent=43 // pred_region
          %s383 = sand.u32 %s39, 1
          %s384 = scalar_lea.sflag [#allocation3], %s383
          %s385 = sand.u32 %s39, 1
          %s386 = smul.addr %s385, 16
          %s387 = scalar_lea.vmem [#allocation2], %s386
          %389 = vsyncadd %s384, 0
          %s390 = smul.addr %s29, 2
          %s391 = smul.addr %s390, 8
          %s392 = scalar_lea.hbm %s0, %s391
          %s393 = sshll.u32 %s392, 4
          %s394 = int_to_ptr.hbm [resolvable:$true] %s393
          %s395 = sshll.u32 %s387, 4
          %s396 = int_to_ptr.vmem [resolvable:$true] %s395
          %401 = dma.hbm_to_vmem [thread:$0]  %s394, 256, %s396, %s384, 128, 128, 8
        $region48: #{tpu_custom_call.1} parent=43 // pred_fallthru
          _
        // Predicated region
        $region49: #{tpu_custom_call.1} parent=43 // pred_check
          %p402 = pneg %p222
        $region50: #{tpu_custom_call.1} parent=43 // pred_check_branch
          %404 = sbr.rel (%p402) target = $region52
        $region51: #{tpu_custom_call.1} parent=43 // pred_region
          %p405 = scmp.lt.s32.totalorder %s29, 1
          %s406 = scalar_select %p405, %s29, 1
          %s407 = scalar_lea.vmem %s8, %s406
        $region52: #{tpu_custom_call.1} parent=43 // pred_fallthru
          _
      $region44: #{tpu_custom_call.1} parent=5 // pred_fallthru
        _
      %p408 = scmp.le.s32.totalorder 1, %s29
      %p409 = scmp.lt.s32.totalorder %s29, 3
      %p410 = pnand %p408, %p409
      %p411 = pneg %p410
      // Predicated region
      $region53: #{tpu_custom_call.1} parent=5 // pred_check
        _
      $region54: #{tpu_custom_call.1} parent=5 // pred_check_branch
        %413 = sbr.rel (%p410) target = $region56
      $region55: #{tpu_custom_call.1} parent=5 // pred_region
        %s414 = ssub.s32 %s29, 1
        %s415 = sand.u32 %s42, 1
        %s416 = scalar_lea.sflag [#allocation3], %s415
        %s417 = sand.u32 %s42, 1
        %s418 = smul.addr %s417, 16
        %s419 = scalar_lea.vmem [#allocation2], %s418
        // Predicated region
        $region57: #{tpu_custom_call.1} parent=55 // pred_check
          %p420 = pneg %p55
        $region58: #{tpu_custom_call.1} parent=55 // pred_check_branch
          %422 = sbr.rel (%p420) target = $region60
        $region59: #{tpu_custom_call.1} parent=55 // pred_region
          %424 = dma.done %s416, 256
        $region60: #{tpu_custom_call.1} parent=55 // pred_fallthru
          _
        // Predicated region
        $region61: #{tpu_custom_call.1} parent=55 // pred_check
          %p425 = pneg %p76
        $region62: #{tpu_custom_call.1} parent=55 // pred_check_branch
          %427 = sbr.rel (%p425) target = $region64
        $region63: #{tpu_custom_call.1} parent=55 // pred_region
          %429 = dma.done [#allocation6], 16
        $region64: #{tpu_custom_call.1} parent=55 // pred_fallthru
          _
        // Predicated region
        $region65: #{tpu_custom_call.1} parent=55 // pred_check
          %p430 = pneg %p97
        $region66: #{tpu_custom_call.1} parent=55 // pred_check_branch
          %432 = sbr.rel (%p430) target = $region68
        $region67: #{tpu_custom_call.1} parent=55 // pred_region
          %434 = dma.done [#allocation6], 16
        $region68: #{tpu_custom_call.1} parent=55 // pred_fallthru
          _
        // Predicated region
        $region69: #{tpu_custom_call.1} parent=55 // pred_check
          %p435 = pneg %p118
        $region70: #{tpu_custom_call.1} parent=55 // pred_check_branch
          %437 = sbr.rel (%p435) target = $region72
        $region71: #{tpu_custom_call.1} parent=55 // pred_region
          %439 = dma.done [#allocation9], 3072
        $region72: #{tpu_custom_call.1} parent=55 // pred_fallthru
          _
        // Predicated region
        $region73: #{tpu_custom_call.1} parent=55 // pred_check
          %p440 = pneg %p160
        $region74: #{tpu_custom_call.1} parent=55 // pred_check_branch
          %442 = sbr.rel (%p440) target = $region76
        $region75: #{tpu_custom_call.1} parent=55 // pred_region
          %444 = dma.done [#allocation9], 1024
        $region76: #{tpu_custom_call.1} parent=55 // pred_fallthru
          _
        // Predicated region
        $region77: #{tpu_custom_call.1} parent=55 // pred_check
          %p445 = pneg %p181
        $region78: #{tpu_custom_call.1} parent=55 // pred_check_branch
          %447 = sbr.rel (%p445) target = $region80
        $region79: #{tpu_custom_call.1} parent=55 // pred_region
          %449 = dma.done [#allocation12], 16
        $region80: #{tpu_custom_call.1} parent=55 // pred_fallthru
          _
        // Predicated region
        $region81: #{tpu_custom_call.1} parent=55 // pred_check
          %p450 = pneg %p202
        $region82: #{tpu_custom_call.1} parent=55 // pred_check_branch
          %452 = sbr.rel (%p450) target = $region84
        $region83: #{tpu_custom_call.1} parent=55 // pred_region
          %454 = dma.done [#allocation12], 256
        $region84: #{tpu_custom_call.1} parent=55 // pred_fallthru
          _
        %s455 = sand.u32 %s42, 1
        %s456 = scalar_lea.sflag [#allocation3], %s455
        %s457 = sand.u32 %s42, 1
        %s458 = smul.addr %s457, 16
        %s459 = scalar_lea.vmem [#allocation2], %s458
        %p460 = pneg %p55
        %p461 = pneg %p52
        %p462 = pneg %p76
        %p463 = pneg %p73
        %p464 = pneg %p97
        %p465 = pneg %p94
        %p466 = pneg %p118
        %p467 = pneg %p115
        %p468 = pneg %p139
        %p469 = pneg %p136
        %p470 = pneg %p160
        %p471 = pneg %p157
        %p472 = pneg %p181
        %p473 = pneg %p178
        %p474 = pneg %p202
        %p475 = pneg %p199
        %p476 = scmp.lt.s32.totalorder %s34, 1
        %s477 = scalar_select %p476, %s34, 1
        %s478 = scalar_lea.vmem %s8, %s477
        %p479 = pneg %p228
        %p480 = pneg %p225
        %p481 = pneg %p254
        %p482 = pneg %p251
        %s483 = sand.u32 %s241, 1
        %s484 = scalar_lea.sflag [#allocation4], %s483
        %s485 = sand.u32 %s241, 1
        %s486 = smul.addr %s485, 16
        %s487 = scalar_lea.vmem [#allocation14], %s486
        %p488 = pneg %p280
        %p489 = pneg %p277
        %s490 = sand.u32 %s267, 1
        %s491 = scalar_lea.sflag [#allocation16], %s490
        %s492 = sand.u32 %s267, 1
        %s493 = smul.addr %s492, 16
        %s494 = scalar_lea.vmem [#allocation15], %s493
        %p495 = scmp.lt.s32.totalorder %s34, 1
        %s496 = scalar_select %p495, %s34, 1
        %s497 = scalar_lea.vmem %s8, %s496
        %v499 = vld [vmem:[%s419] sm:$0xff]
        %v500 = vld [vmem:[%s419 + $0x8] sm:$0xff]
        %501 = vadd.xlane.f32.xlu0 %v499
        %v502 = vpop.xlane.xlu0 %501
        %503 = vadd.xlane.f32.xlu0 %v500
        %v504 = vpop.xlane.xlu0 %503
        %v505 = vrcp.pop 128.0
        %v506 = vmul.f32 128.0, %v505
        %v507 = vsub.f32 1.0, %v506
        %v508 = vmul.f32 %v505, %v507
        %v509 = vadd.f32 %v505, %v508
        %vm510 = vweird.f32 %v505
        %v511 = vsel %vm510, %v505, %v509
        %v512 = vmul.f32 %v502, %v511
        %v513 = vmul.f32 %v504, %v511
        %v514 = vsub.f32 %v499, %v512
        %v515 = vsub.f32 %v500, %v513
        %v516 = vmul.f32 %v514, %v514
        %v517 = vmul.f32 %v515, %v515
        %518 = vadd.xlane.f32.xlu0 %v516
        %v519 = vpop.xlane.xlu0 %518
        %520 = vadd.xlane.f32.xlu0 %v517
        %v521 = vpop.xlane.xlu0 %520
        %v522 = vmul.f32 %v519, %v511
        %v523 = vmul.f32 %v521, %v511
        %v524 = vadd.f32 %v522, 1e-05
        %v525 = vadd.f32 %v523, 1e-05
        %v526 = vrsqrt.pop %v524
        %v527 = vmul.f32 %v526, %v524
        %v528 = vmul.f32 %v527, %v526
        %v529 = vmul.f32 0.5, %v528
        %v530 = vsub.f32 1.5, %v529
        %v531 = vmul.f32 %v526, %v530
        %vm532 = vweird.f32 %v524
        %vm533 = vweird.f32 %v526
        %vm534 = vmor %vm532, %vm533
        %v535 = vsel %vm534, %v526, %v531
        %v536 = vrsqrt.pop %v525
        %v537 = vmul.f32 %v536, %v525
        %v538 = vmul.f32 %v537, %v536
        %v539 = vmul.f32 0.5, %v538
        %v540 = vsub.f32 1.5, %v539
        %v541 = vmul.f32 %v536, %v540
        %vm542 = vweird.f32 %v525
        %vm543 = vweird.f32 %v536
        %vm544 = vmor %vm542, %vm543
        %v545 = vsel %vm544, %v536, %v541
        %v546 = vmul.f32 %v514, %v535
        %v547 = vmul.f32 %v515, %v545
        %v548 = vld [vmem:[#allocation5] sm:$0x1]
        %v550 = vperm.slane %v548, 0
        %v552 = vmul.f32 %v546, %v550
        %v553 = vmul.f32 %v547, %v550
        %v554 = vld [vmem:[#allocation7] sm:$0x1]
        %v556 = vperm.slane %v554, 0
        %v558 = vadd.f32 %v552, %v556
        %v559 = vadd.f32 %v553, %v556
        %v560 = vpack.c.bf16 %v559, %v558
        %v561 = vld [vmem:[#allocation8] sm:$0xff]
        %v562 = vld [vmem:[#allocation8 + $0x8] sm:$0xf]
        %v563 = vld [vmem:[#allocation8 + $0xc] sm:$0xff]
        %v564 = vld [vmem:[#allocation8 + $0x14] sm:$0xf]
        %v565 = vld [vmem:[#allocation8 + $0x18] sm:$0xff]
        %v566 = vld [vmem:[#allocation8 + $0x20] sm:$0xf]
        %v567 = vld [vmem:[#allocation8 + $0x24] sm:$0xff]
        %v568 = vld [vmem:[#allocation8 + $0x2c] sm:$0xf]
        %v569 = vld [vmem:[#allocation8 + $0x30] sm:$0xff]
        %v570 = vld [vmem:[#allocation8 + $0x38] sm:$0xf]
        %v571 = vld [vmem:[#allocation8 + $0x3c] sm:$0xff]
        %v572 = vld [vmem:[#allocation8 + $0x44] sm:$0xf]
        %v573 = vld [vmem:[#allocation8 + $0x48] sm:$0xff]
        %v574 = vld [vmem:[#allocation8 + $0x50] sm:$0xf]
        %v575 = vld [vmem:[#allocation8 + $0x54] sm:$0xff]
        %v576 = vld [vmem:[#allocation8 + $0x5c] sm:$0xf]
        %v577 = vld [vmem:[#allocation8 + $0x60] sm:$0xff]
        %v578 = vld [vmem:[#allocation8 + $0x68] sm:$0xf]
        %v579 = vld [vmem:[#allocation8 + $0x6c] sm:$0xff]
        %v580 = vld [vmem:[#allocation8 + $0x74] sm:$0xf]
        %v581 = vld [vmem:[#allocation8 + $0x78] sm:$0xff]
        %v582 = vld [vmem:[#allocation8 + $0x80] sm:$0xf]
        %v583 = vld [vmem:[#allocation8 + $0x84] sm:$0xff]
        %v584 = vld [vmem:[#allocation8 + $0x8c] sm:$0xf]
        %v585 = vld [vmem:[#allocation8 + $0x90] sm:$0xff]
        %v586 = vld [vmem:[#allocation8 + $0x98] sm:$0xf]
        %v587 = vld [vmem:[#allocation8 + $0x9c] sm:$0xff]
        %v588 = vld [vmem:[#allocation8 + $0xa4] sm:$0xf]
        %v589 = vld [vmem:[#allocation8 + $0xa8] sm:$0xff]
        %v590 = vld [vmem:[#allocation8 + $0xb0] sm:$0xf]
        %v591 = vld [vmem:[#allocation8 + $0xb4] sm:$0xff]
        %v592 = vld [vmem:[#allocation8 + $0xbc] sm:$0xf]
        %v593 = vld [vmem:[%s4] sm:$0x7]
        %v595 = vperm.slane %v593, 0
        %v596 = vperm.slane %v593, 1
        %v597 = vperm.slane %v593, 2
        %v633 = vunpack.c.l.b16 %v561
        %v634 = vunpack.c.h.b16 %v561
        %v635 = vunpack.c.l.b16 %v562
        %v636 = vunpack.c.l.b16 %v563
        %v637 = vunpack.c.h.b16 %v563
        %v638 = vunpack.c.l.b16 %v564
        %v639 = vunpack.c.l.b16 %v565
        %v640 = vunpack.c.h.b16 %v565
        %v641 = vunpack.c.l.b16 %v566
        %v642 = vunpack.c.l.b16 %v567
        %v643 = vunpack.c.h.b16 %v567
        %v644 = vunpack.c.l.b16 %v568
        %v645 = vunpack.c.l.b16 %v569
        %v646 = vunpack.c.h.b16 %v569
        %v647 = vunpack.c.l.b16 %v570
        %v648 = vunpack.c.l.b16 %v571
        %v649 = vunpack.c.h.b16 %v571
        %v650 = vunpack.c.l.b16 %v572
        %v651 = vunpack.c.l.b16 %v573
        %v652 = vunpack.c.h.b16 %v573
        %v653 = vunpack.c.l.b16 %v574
        %v654 = vunpack.c.l.b16 %v575
        %v655 = vunpack.c.h.b16 %v575
        %v656 = vunpack.c.l.b16 %v576
        %v657 = vunpack.c.l.b16 %v577
        %v658 = vunpack.c.h.b16 %v577
        %v659 = vunpack.c.l.b16 %v578
        %v660 = vunpack.c.l.b16 %v579
        %v661 = vunpack.c.h.b16 %v579
        %v662 = vunpack.c.l.b16 %v580
        %v663 = vunpack.c.l.b16 %v581
        %v664 = vunpack.c.h.b16 %v581
        %v665 = vunpack.c.l.b16 %v582
        %v666 = vunpack.c.l.b16 %v583
        %v667 = vunpack.c.h.b16 %v583
        %v668 = vunpack.c.l.b16 %v584
        %v669 = vunpack.c.l.b16 %v585
        %v670 = vunpack.c.h.b16 %v585
        %v671 = vunpack.c.l.b16 %v586
        %v672 = vunpack.c.l.b16 %v587
        %v673 = vunpack.c.h.b16 %v587
        %v674 = vunpack.c.l.b16 %v588
        %v675 = vunpack.c.l.b16 %v589
        %v676 = vunpack.c.h.b16 %v589
        %v677 = vunpack.c.l.b16 %v590
        %v678 = vunpack.c.l.b16 %v591
        %v679 = vunpack.c.h.b16 %v591
        %v680 = vunpack.c.l.b16 %v592
        %v681 = vpack.c.b16 %v636, %v633
        %v682 = vpack.c.b16 %v637, %v634
        %v683 = vpack.c.b16 %v638, %v635
        %v684 = vpack.c.b16 %v642, %v639
        %v685 = vpack.c.b16 %v643, %v640
        %v686 = vpack.c.b16 %v644, %v641
        %v687 = vpack.c.b16 %v648, %v645
        %v688 = vpack.c.b16 %v649, %v646
        %v689 = vpack.c.b16 %v650, %v647
        %v690 = vpack.c.b16 %v654, %v651
        %v691 = vpack.c.b16 %v655, %v652
        %v692 = vpack.c.b16 %v656, %v653
        %v693 = vpack.c.b16 %v660, %v657
        %v694 = vpack.c.b16 %v661, %v658
        %v695 = vpack.c.b16 %v662, %v659
        %v696 = vpack.c.b16 %v666, %v663
        %v697 = vpack.c.b16 %v667, %v664
        %v698 = vpack.c.b16 %v668, %v665
        %v699 = vpack.c.b16 %v672, %v669
        %v700 = vpack.c.b16 %v673, %v670
        %v701 = vpack.c.b16 %v674, %v671
        %v702 = vpack.c.b16 %v678, %v675
        %v703 = vpack.c.b16 %v679, %v676
        %v704 = vpack.c.b16 %v680, %v677
        %729 = vmatpush.bf16.msra.mxu0 %v702
        %730 = vmatpush.bf16.msra.mxu0 %v699
        %731 = vmatpush.bf16.msra.mxu0 %v696
        %732 = vmatpush.bf16.msra.mxu0 %v693
        %733 = vmatpush.bf16.msra.mxu0 %v690
        %734 = vmatpush.bf16.msra.mxu0 %v687
        %735 = vmatpush.bf16.msra.mxu0 %v684
        %736 = vmatpush.bf16.msra.mxu0 %v681
        %737 = vmatmul.bf16.gmra.mxu0 %v560
        %v738 = vpop.f32.mrf.mxu0
        %v739 = vadd.f32 %v595, %v738
        %v740 = vpop.f32.mrf.mxu0
        %v741 = vadd.f32 %v595, %v740
        %742 = vdwg.mxu0
        %743 = vmatpush.bf16.msra.mxu0 %v703
        %744 = vmatpush.bf16.msra.mxu0 %v700
        %745 = vmatpush.bf16.msra.mxu0 %v697
        %746 = vmatpush.bf16.msra.mxu0 %v694
        %747 = vmatpush.bf16.msra.mxu0 %v691
        %748 = vmatpush.bf16.msra.mxu0 %v688
        %749 = vmatpush.bf16.msra.mxu0 %v685
        %750 = vmatpush.bf16.msra.mxu0 %v682
        %751 = vmatmul.bf16.gmra.mxu0 %v560
        %v752 = vpop.f32.mrf.mxu0
        %v753 = vadd.f32 %v596, %v752
        %v754 = vpop.f32.mrf.mxu0
        %v755 = vadd.f32 %v596, %v754
        %756 = vdwg.mxu0
        %757 = vmatpush.bf16.msra.mxu0 %v704
        %758 = vmatpush.bf16.msra.mxu0 %v701
        %759 = vmatpush.bf16.msra.mxu0 %v698
        %760 = vmatpush.bf16.msra.mxu0 %v695
        %761 = vmatpush.bf16.msra.mxu0 %v692
        %762 = vmatpush.bf16.msra.mxu0 %v689
        %763 = vmatpush.bf16.msra.mxu0 %v686
        %764 = vmatpush.bf16.msra.mxu0 %v683
        %765 = vmatmul.bf16.gmra.mxu0 %v560
        %v766 = vpop.f32.mrf.mxu0
        %v767 = vadd.f32 %v597, %v766
        %v768 = vpop.f32.mrf.mxu0
        %v769 = vadd.f32 %v597, %v768
        %770 = vdwg.mxu0
        %v771 = vmul.f32 %v739, 0.25
        %v772 = vmul.f32 %v741, 0.25
        %v773 = vld [vmem:[#allocation13] sm:$0xff]
        %v774 = vld [vmem:[#allocation13 + $0x8] sm:$0xff]
        %v775 = vld [vmem:[%s497] sm:$0x1]
        %v777 = vperm.slane %v775, 0
        %v779 = vadd.f32 %v773, %v777
        %v780 = vadd.f32 %v774, %v777
        %v781 = vpack.c.bf16 %v772, %v771
        %v782 = vpack.c.bf16 %v755, %v753
        %v783 = vpack.c.bf16 %v769, %v767
        %vm784 = vcmask 130048
        %v786 = vsel %vm784, %v781, 0
        %v789 = vsel %vm784, %v782, 0
        %791 = vmatpush.bf16.xpose.msra.mxu0 0
        %792 = vmatpush.bf16.xpose.msra.mxu0 0
        %793 = vmatpush.bf16.xpose.msra.mxu0 0
        %794 = vmatpush.bf16.xpose.msra.mxu0 0
        %795 = vmatpush.bf16.xpose.msra.mxu0 0
        %796 = vmatpush.bf16.xpose.msra.mxu0 0
        %797 = vmatpush.bf16.xpose.msra.mxu0 0
        %798 = vmatpush.bf16.xpose.msra.mxu0 %v789
        %799 = vmatmul.bf16.gmra.mxu0 %v786
        %v800 = vpop.f32.mrf.mxu0
        %v801 = vadd.f32 %v779, %v800
        %v802 = vpop.f32.mrf.mxu0
        %v803 = vadd.f32 %v780, %v802
        %804 = vdwg.mxu0
        %v805 = vsel %vm784, %v801, -inf
        %806 = vmax.xlane.f32.xlu0 %v805
        %v807 = vpop.xlane.xlu0 %806
        %v808 = vsel %vm784, %v803, -inf
        %809 = vmax.xlane.f32.xlu0 %v808
        %v810 = vpop.xlane.xlu0 %809
        %v811 = vsub.f32 %v801, %v807
        %v812 = vsub.f32 %v803, %v810
        %v813 = vmul.f32 %v811, 1.442695
        %v814 = vpow.pop %v813
        %v815 = vmul.f32 %v812, 1.442695
        %v816 = vpow.pop %v815
        %v817 = vsel %vm784, %v814, 0.0
        %818 = vadd.xlane.f32.xlu0 %v817
        %v819 = vpop.xlane.xlu0 %818
        %v820 = vsel %vm784, %v816, 0.0
        %821 = vadd.xlane.f32.xlu0 %v820
        %v822 = vpop.xlane.xlu0 %821
        %v823 = vrcp.pop %v819
        %v824 = vrcp.pop %v822
        %v825 = vmul.f32 %v814, %v823
        %v826 = vmul.f32 %v816, %v824
        %v827 = vadd.f32 %v825, 0.0
        %v828 = vadd.f32 %v826, 0.0
        %v829 = vpack.c.bf16 %v826, %v825
        %v831 = vsel %vm784, %v829, 0
        %833 = vmatpush.bf16.msra.mxu0 0
        %834 = vmatpush.bf16.msra.mxu0 0
        %835 = vmatpush.bf16.msra.mxu0 0
        %836 = vmatpush.bf16.msra.mxu0 0
        %837 = vmatpush.bf16.msra.mxu0 0
        %838 = vmatpush.bf16.msra.mxu0 0
        %839 = vmatpush.bf16.msra.mxu0 0
        %840 = vmatpush.bf16.msra.mxu0 %v783
        %841 = vmatmul.bf16.gmra.mxu0 %v831
        %v842 = vpop.f32.mrf.mxu0
        %v843 = vadd.f32 0.0, %v842
        %v844 = vpop.f32.mrf.mxu0
        %v845 = vadd.f32 0.0, %v844
        %846 = vdwg.mxu0
        %848 = vrot.lane.b32.xlu0 %v781, 112
        %v849 = vpop.permute.xlu0 %848
        %851 = vrot.lane.b32.xlu0 %v782, 112
        %v852 = vpop.permute.xlu0 %851
        %v854 = vsel %vm784, %v849, 0
        %v857 = vsel %vm784, %v852, 0
        %859 = vmatpush.bf16.xpose.msra.mxu0 0
        %860 = vmatpush.bf16.xpose.msra.mxu0 0
        %861 = vmatpush.bf16.xpose.msra.mxu0 0
        %862 = vmatpush.bf16.xpose.msra.mxu0 0
        %863 = vmatpush.bf16.xpose.msra.mxu0 0
        %864 = vmatpush.bf16.xpose.msra.mxu0 0
        %865 = vmatpush.bf16.xpose.msra.mxu0 0
        %866 = vmatpush.bf16.xpose.msra.mxu0 %v857
        %867 = vmatmul.bf16.gmra.mxu0 %v854
        %v868 = vpop.f32.mrf.mxu0
        %v869 = vadd.f32 %v779, %v868
        %v870 = vpop.f32.mrf.mxu0
        %v871 = vadd.f32 %v780, %v870
        %872 = vdwg.mxu0
        %v873 = vsel %vm784, %v869, -inf
        %874 = vmax.xlane.f32.xlu0 %v873
        %v875 = vpop.xlane.xlu0 %874
        %v876 = vsel %vm784, %v871, -inf
        %877 = vmax.xlane.f32.xlu0 %v876
        %v878 = vpop.xlane.xlu0 %877
        %v879 = vsub.f32 %v869, %v875
        %v880 = vsub.f32 %v871, %v878
        %v881 = vmul.f32 %v879, 1.442695
        %v882 = vpow.pop %v881
        %v883 = vmul.f32 %v880, 1.442695
        %v884 = vpow.pop %v883
        %v885 = vsel %vm784, %v882, 0.0
        %886 = vadd.xlane.f32.xlu0 %v885
        %v887 = vpop.xlane.xlu0 %886
        %v888 = vsel %vm784, %v884, 0.0
        %889 = vadd.xlane.f32.xlu0 %v888
        %v890 = vpop.xlane.xlu0 %889
        %v891 = vrcp.pop %v887
        %v892 = vrcp.pop %v890
        %v893 = vmul.f32 %v882, %v891
        %v894 = vmul.f32 %v884, %v892
        %v895 = vadd.f32 %v827, %v893
        %v896 = vadd.f32 %v828, %v894
        %v897 = vpack.c.bf16 %v894, %v893
        %899 = vrot.lane.b32.xlu0 %v783, 112
        %v900 = vpop.permute.xlu0 %899
        %v903 = vsel %vm784, %v897, 0
        %905 = vmatpush.bf16.msra.mxu0 0
        %906 = vmatpush.bf16.msra.mxu0 0
        %907 = vmatpush.bf16.msra.mxu0 0
        %908 = vmatpush.bf16.msra.mxu0 0
        %909 = vmatpush.bf16.msra.mxu0 0
        %910 = vmatpush.bf16.msra.mxu0 0
        %911 = vmatpush.bf16.msra.mxu0 0
        %912 = vmatpush.bf16.msra.mxu0 %v900
        %913 = vmatmul.bf16.gmra.mxu0 %v903
        %v914 = vpop.f32.mrf.mxu0
        %v915 = vadd.f32 0.0, %v914
        %v916 = vpop.f32.mrf.mxu0
        %v917 = vadd.f32 0.0, %v916
        %918 = vdwg.mxu0
        %919 = vrot.lane.b32.xlu0 %v781, 96
        %v920 = vpop.permute.xlu0 %919
        %921 = vrot.lane.b32.xlu0 %v782, 96
        %v922 = vpop.permute.xlu0 %921
        %v924 = vsel %vm784, %v920, 0
        %v927 = vsel %vm784, %v922, 0
        %929 = vmatpush.bf16.xpose.msra.mxu0 0
        %930 = vmatpush.bf16.xpose.msra.mxu0 0
        %931 = vmatpush.bf16.xpose.msra.mxu0 0
        %932 = vmatpush.bf16.xpose.msra.mxu0 0
        %933 = vmatpush.bf16.xpose.msra.mxu0 0
        %934 = vmatpush.bf16.xpose.msra.mxu0 0
        %935 = vmatpush.bf16.xpose.msra.mxu0 0
        %936 = vmatpush.bf16.xpose.msra.mxu0 %v927
        %937 = vmatmul.bf16.gmra.mxu0 %v924
        %v938 = vpop.f32.mrf.mxu0
        %v939 = vadd.f32 %v779, %v938
        %v940 = vpop.f32.mrf.mxu0
        %v941 = vadd.f32 %v780, %v940
        %942 = vdwg.mxu0
        %v943 = vsel %vm784, %v939, -inf
        %944 = vmax.xlane.f32.xlu0 %v943
        %v945 = vpop.xlane.xlu0 %944
        %v946 = vsel %vm784, %v941, -inf
        %947 = vmax.xlane.f32.xlu0 %v946
        %v948 = vpop.xlane.xlu0 %947
        %v949 = vsub.f32 %v939, %v945
        %v950 = vsub.f32 %v941, %v948
        %v951 = vmul.f32 %v949, 1.442695
        %v952 = vpow.pop %v951
        %v953 = vmul.f32 %v950, 1.442695
        %v954 = vpow.pop %v953
        %v955 = vsel %vm784, %v952, 0.0
        %956 = vadd.xlane.f32.xlu0 %v955
        %v957 = vpop.xlane.xlu0 %956
        %v958 = vsel %vm784, %v954, 0.0
        %959 = vadd.xlane.f32.xlu0 %v958
        %v960 = vpop.xlane.xlu0 %959
        %v961 = vrcp.pop %v957
        %v962 = vrcp.pop %v960
        %v963 = vmul.f32 %v952, %v961
        %v964 = vmul.f32 %v954, %v962
        %v965 = vadd.f32 %v895, %v963
        %v966 = vadd.f32 %v896, %v964
        %v967 = vpack.c.bf16 %v964, %v963
        %968 = vrot.lane.b32.xlu0 %v783, 96
        %v969 = vpop.permute.xlu0 %968
        %v972 = vsel %vm784, %v967, 0
        %974 = vmatpush.bf16.msra.mxu0 0
        %975 = vmatpush.bf16.msra.mxu0 0
        %976 = vmatpush.bf16.msra.mxu0 0
        %977 = vmatpush.bf16.msra.mxu0 0
        %978 = vmatpush.bf16.msra.mxu0 0
        %979 = vmatpush.bf16.msra.mxu0 0
        %980 = vmatpush.bf16.msra.mxu0 0
        %981 = vmatpush.bf16.msra.mxu0 %v969
        %982 = vmatmul.bf16.gmra.mxu0 %v972
        %v983 = vpop.f32.mrf.mxu0
        %v984 = vadd.f32 0.0, %v983
        %v985 = vpop.f32.mrf.mxu0
        %v986 = vadd.f32 0.0, %v985
        %987 = vdwg.mxu0
        %988 = vrot.lane.b32.xlu0 %v781, 80
        %v989 = vpop.permute.xlu0 %988
        %990 = vrot.lane.b32.xlu0 %v782, 80
        %v991 = vpop.permute.xlu0 %990
        %v993 = vsel %vm784, %v989, 0
        %v996 = vsel %vm784, %v991, 0
        %998 = vmatpush.bf16.xpose.msra.mxu0 0
        %999 = vmatpush.bf16.xpose.msra.mxu0 0
        %1000 = vmatpush.bf16.xpose.msra.mxu0 0
        %1001 = vmatpush.bf16.xpose.msra.mxu0 0
        %1002 = vmatpush.bf16.xpose.msra.mxu0 0
        %1003 = vmatpush.bf16.xpose.msra.mxu0 0
        %1004 = vmatpush.bf16.xpose.msra.mxu0 0
        %1005 = vmatpush.bf16.xpose.msra.mxu0 %v996
        %1006 = vmatmul.bf16.gmra.mxu0 %v993
        %v1007 = vpop.f32.mrf.mxu0
        %v1008 = vadd.f32 %v779, %v1007
        %v1009 = vpop.f32.mrf.mxu0
        %v1010 = vadd.f32 %v780, %v1009
        %1011 = vdwg.mxu0
        %v1012 = vsel %vm784, %v1008, -inf
        %1013 = vmax.xlane.f32.xlu0 %v1012
        %v1014 = vpop.xlane.xlu0 %1013
        %v1015 = vsel %vm784, %v1010, -inf
        %1016 = vmax.xlane.f32.xlu0 %v1015
        %v1017 = vpop.xlane.xlu0 %1016
        %v1018 = vsub.f32 %v1008, %v1014
        %v1019 = vsub.f32 %v1010, %v1017
        %v1020 = vmul.f32 %v1018, 1.442695
        %v1021 = vpow.pop %v1020
        %v1022 = vmul.f32 %v1019, 1.442695
        %v1023 = vpow.pop %v1022
        %v1024 = vsel %vm784, %v1021, 0.0
        %1025 = vadd.xlane.f32.xlu0 %v1024
        %v1026 = vpop.xlane.xlu0 %1025
        %v1027 = vsel %vm784, %v1023, 0.0
        %1028 = vadd.xlane.f32.xlu0 %v1027
        %v1029 = vpop.xlane.xlu0 %1028
        %v1030 = vrcp.pop %v1026
        %v1031 = vrcp.pop %v1029
        %v1032 = vmul.f32 %v1021, %v1030
        %v1033 = vmul.f32 %v1023, %v1031
        %v1034 = vadd.f32 %v965, %v1032
        %v1035 = vadd.f32 %v966, %v1033
        %v1036 = vpack.c.bf16 %v1033, %v1032
        %1037 = vrot.lane.b32.xlu0 %v783, 80
        %v1038 = vpop.permute.xlu0 %1037
        %v1041 = vsel %vm784, %v1036, 0
        %1043 = vmatpush.bf16.msra.mxu0 0
        %1044 = vmatpush.bf16.msra.mxu0 0
        %1045 = vmatpush.bf16.msra.mxu0 0
        %1046 = vmatpush.bf16.msra.mxu0 0
        %1047 = vmatpush.bf16.msra.mxu0 0
        %1048 = vmatpush.bf16.msra.mxu0 0
        %1049 = vmatpush.bf16.msra.mxu0 0
        %1050 = vmatpush.bf16.msra.mxu0 %v1038
        %1051 = vmatmul.bf16.gmra.mxu0 %v1041
        %v1052 = vpop.f32.mrf.mxu0
        %v1053 = vadd.f32 0.0, %v1052
        %v1054 = vpop.f32.mrf.mxu0
        %v1055 = vadd.f32 0.0, %v1054
        %1056 = vdwg.mxu0
        %1057 = vrot.lane.b32.xlu0 %v781, 64
        %v1058 = vpop.permute.xlu0 %1057
        %1059 = vrot.lane.b32.xlu0 %v782, 64
        %v1060 = vpop.permute.xlu0 %1059
        %v1062 = vsel %vm784, %v1058, 0
        %v1065 = vsel %vm784, %v1060, 0
        %1067 = vmatpush.bf16.xpose.msra.mxu0 0
        %1068 = vmatpush.bf16.xpose.msra.mxu0 0
        %1069 = vmatpush.bf16.xpose.msra.mxu0 0
        %1070 = vmatpush.bf16.xpose.msra.mxu0 0
        %1071 = vmatpush.bf16.xpose.msra.mxu0 0
        %1072 = vmatpush.bf16.xpose.msra.mxu0 0
        %1073 = vmatpush.bf16.xpose.msra.mxu0 0
        %1074 = vmatpush.bf16.xpose.msra.mxu0 %v1065
        %1075 = vmatmul.bf16.gmra.mxu0 %v1062
        %v1076 = vpop.f32.mrf.mxu0
        %v1077 = vadd.f32 %v779, %v1076
        %v1078 = vpop.f32.mrf.mxu0
        %v1079 = vadd.f32 %v780, %v1078
        %1080 = vdwg.mxu0
        %v1081 = vsel %vm784, %v1077, -inf
        %1082 = vmax.xlane.f32.xlu0 %v1081
        %v1083 = vpop.xlane.xlu0 %1082
        %v1084 = vsel %vm784, %v1079, -inf
        %1085 = vmax.xlane.f32.xlu0 %v1084
        %v1086 = vpop.xlane.xlu0 %1085
        %v1087 = vsub.f32 %v1077, %v1083
        %v1088 = vsub.f32 %v1079, %v1086
        %v1089 = vmul.f32 %v1087, 1.442695
        %v1090 = vpow.pop %v1089
        %v1091 = vmul.f32 %v1088, 1.442695
        %v1092 = vpow.pop %v1091
        %v1093 = vsel %vm784, %v1090, 0.0
        %1094 = vadd.xlane.f32.xlu0 %v1093
        %v1095 = vpop.xlane.xlu0 %1094
        %v1096 = vsel %vm784, %v1092, 0.0
        %1097 = vadd.xlane.f32.xlu0 %v1096
        %v1098 = vpop.xlane.xlu0 %1097
        %v1099 = vrcp.pop %v1095
        %v1100 = vrcp.pop %v1098
        %v1101 = vmul.f32 %v1090, %v1099
        %v1102 = vmul.f32 %v1092, %v1100
        %v1103 = vadd.f32 %v1034, %v1101
        %v1104 = vadd.f32 %v1035, %v1102
        %v1105 = vpack.c.bf16 %v1102, %v1101
        %1106 = vrot.lane.b32.xlu0 %v783, 64
        %v1107 = vpop.permute.xlu0 %1106
        %v1110 = vsel %vm784, %v1105, 0
        %1112 = vmatpush.bf16.msra.mxu0 0
        %1113 = vmatpush.bf16.msra.mxu0 0
        %1114 = vmatpush.bf16.msra.mxu0 0
        %1115 = vmatpush.bf16.msra.mxu0 0
        %1116 = vmatpush.bf16.msra.mxu0 0
        %1117 = vmatpush.bf16.msra.mxu0 0
        %1118 = vmatpush.bf16.msra.mxu0 0
        %1119 = vmatpush.bf16.msra.mxu0 %v1107
        %1120 = vmatmul.bf16.gmra.mxu0 %v1110
        %v1121 = vpop.f32.mrf.mxu0
        %v1122 = vadd.f32 0.0, %v1121
        %v1123 = vpop.f32.mrf.mxu0
        %v1124 = vadd.f32 0.0, %v1123
        %1125 = vdwg.mxu0
        %1126 = vrot.lane.b32.xlu0 %v781, 48
        %v1127 = vpop.permute.xlu0 %1126
        %1128 = vrot.lane.b32.xlu0 %v782, 48
        %v1129 = vpop.permute.xlu0 %1128
        %v1131 = vsel %vm784, %v1127, 0
        %v1134 = vsel %vm784, %v1129, 0
        %1136 = vmatpush.bf16.xpose.msra.mxu0 0
        %1137 = vmatpush.bf16.xpose.msra.mxu0 0
        %1138 = vmatpush.bf16.xpose.msra.mxu0 0
        %1139 = vmatpush.bf16.xpose.msra.mxu0 0
        %1140 = vmatpush.bf16.xpose.msra.mxu0 0
        %1141 = vmatpush.bf16.xpose.msra.mxu0 0
        %1142 = vmatpush.bf16.xpose.msra.mxu0 0
        %1143 = vmatpush.bf16.xpose.msra.mxu0 %v1134
        %1144 = vmatmul.bf16.gmra.mxu0 %v1131
        %v1145 = vpop.f32.mrf.mxu0
        %v1146 = vadd.f32 %v779, %v1145
        %v1147 = vpop.f32.mrf.mxu0
        %v1148 = vadd.f32 %v780, %v1147
        %1149 = vdwg.mxu0
        %v1150 = vsel %vm784, %v1146, -inf
        %1151 = vmax.xlane.f32.xlu0 %v1150
        %v1152 = vpop.xlane.xlu0 %1151
        %v1153 = vsel %vm784, %v1148, -inf
        %1154 = vmax.xlane.f32.xlu0 %v1153
        %v1155 = vpop.xlane.xlu0 %1154
        %v1156 = vsub.f32 %v1146, %v1152
        %v1157 = vsub.f32 %v1148, %v1155
        %v1158 = vmul.f32 %v1156, 1.442695
        %v1159 = vpow.pop %v1158
        %v1160 = vmul.f32 %v1157, 1.442695
        %v1161 = vpow.pop %v1160
        %v1162 = vsel %vm784, %v1159, 0.0
        %1163 = vadd.xlane.f32.xlu0 %v1162
        %v1164 = vpop.xlane.xlu0 %1163
        %v1165 = vsel %vm784, %v1161, 0.0
        %1166 = vadd.xlane.f32.xlu0 %v1165
        %v1167 = vpop.xlane.xlu0 %1166
        %v1168 = vrcp.pop %v1164
        %v1169 = vrcp.pop %v1167
        %v1170 = vmul.f32 %v1159, %v1168
        %v1171 = vmul.f32 %v1161, %v1169
        %v1172 = vadd.f32 %v1103, %v1170
        %v1173 = vadd.f32 %v1104, %v1171
        %v1174 = vpack.c.bf16 %v1171, %v1170
        %1175 = vrot.lane.b32.xlu0 %v783, 48
        %v1176 = vpop.permute.xlu0 %1175
        %v1179 = vsel %vm784, %v1174, 0
        %1181 = vmatpush.bf16.msra.mxu0 0
        %1182 = vmatpush.bf16.msra.mxu0 0
        %1183 = vmatpush.bf16.msra.mxu0 0
        %1184 = vmatpush.bf16.msra.mxu0 0
        %1185 = vmatpush.bf16.msra.mxu0 0
        %1186 = vmatpush.bf16.msra.mxu0 0
        %1187 = vmatpush.bf16.msra.mxu0 0
        %1188 = vmatpush.bf16.msra.mxu0 %v1176
        %1189 = vmatmul.bf16.gmra.mxu0 %v1179
        %v1190 = vpop.f32.mrf.mxu0
        %v1191 = vadd.f32 0.0, %v1190
        %v1192 = vpop.f32.mrf.mxu0
        %v1193 = vadd.f32 0.0, %v1192
        %1194 = vdwg.mxu0
        %1195 = vrot.lane.b32.xlu0 %v781, 32
        %v1196 = vpop.permute.xlu0 %1195
        %1197 = vrot.lane.b32.xlu0 %v782, 32
        %v1198 = vpop.permute.xlu0 %1197
        %v1200 = vsel %vm784, %v1196, 0
        %v1203 = vsel %vm784, %v1198, 0
        %1205 = vmatpush.bf16.xpose.msra.mxu0 0
        %1206 = vmatpush.bf16.xpose.msra.mxu0 0
        %1207 = vmatpush.bf16.xpose.msra.mxu0 0
        %1208 = vmatpush.bf16.xpose.msra.mxu0 0
        %1209 = vmatpush.bf16.xpose.msra.mxu0 0
        %1210 = vmatpush.bf16.xpose.msra.mxu0 0
        %1211 = vmatpush.bf16.xpose.msra.mxu0 0
        %1212 = vmatpush.bf16.xpose.msra.mxu0 %v1203
        %1213 = vmatmul.bf16.gmra.mxu0 %v1200
        %v1214 = vpop.f32.mrf.mxu0
        %v1215 = vadd.f32 %v779, %v1214
        %v1216 = vpop.f32.mrf.mxu0
        %v1217 = vadd.f32 %v780, %v1216
        %1218 = vdwg.mxu0
        %v1219 = vsel %vm784, %v1215, -inf
        %1220 = vmax.xlane.f32.xlu0 %v1219
        %v1221 = vpop.xlane.xlu0 %1220
        %v1222 = vsel %vm784, %v1217, -inf
        %1223 = vmax.xlane.f32.xlu0 %v1222
        %v1224 = vpop.xlane.xlu0 %1223
        %v1225 = vsub.f32 %v1215, %v1221
        %v1226 = vsub.f32 %v1217, %v1224
        %v1227 = vmul.f32 %v1225, 1.442695
        %v1228 = vpow.pop %v1227
        %v1229 = vmul.f32 %v1226, 1.442695
        %v1230 = vpow.pop %v1229
        %v1231 = vsel %vm784, %v1228, 0.0
        %1232 = vadd.xlane.f32.xlu0 %v1231
        %v1233 = vpop.xlane.xlu0 %1232
        %v1234 = vsel %vm784, %v1230, 0.0
        %1235 = vadd.xlane.f32.xlu0 %v1234
        %v1236 = vpop.xlane.xlu0 %1235
        %v1237 = vrcp.pop %v1233
        %v1238 = vrcp.pop %v1236
        %v1239 = vmul.f32 %v1228, %v1237
        %v1240 = vmul.f32 %v1230, %v1238
        %v1241 = vadd.f32 %v1172, %v1239
        %v1242 = vadd.f32 %v1173, %v1240
        %v1243 = vpack.c.bf16 %v1240, %v1239
        %1244 = vrot.lane.b32.xlu0 %v783, 32
        %v1245 = vpop.permute.xlu0 %1244
        %v1248 = vsel %vm784, %v1243, 0
        %1250 = vmatpush.bf16.msra.mxu0 0
        %1251 = vmatpush.bf16.msra.mxu0 0
        %1252 = vmatpush.bf16.msra.mxu0 0
        %1253 = vmatpush.bf16.msra.mxu0 0
        %1254 = vmatpush.bf16.msra.mxu0 0
        %1255 = vmatpush.bf16.msra.mxu0 0
        %1256 = vmatpush.bf16.msra.mxu0 0
        %1257 = vmatpush.bf16.msra.mxu0 %v1245
        %1258 = vmatmul.bf16.gmra.mxu0 %v1248
        %v1259 = vpop.f32.mrf.mxu0
        %v1260 = vadd.f32 0.0, %v1259
        %v1261 = vpop.f32.mrf.mxu0
        %v1262 = vadd.f32 0.0, %v1261
        %1263 = vdwg.mxu0
        %1264 = vrot.lane.b32.xlu0 %v781, 16
        %v1265 = vpop.permute.xlu0 %1264
        %1266 = vrot.lane.b32.xlu0 %v782, 16
        %v1267 = vpop.permute.xlu0 %1266
        %v1269 = vsel %vm784, %v1265, 0
        %v1272 = vsel %vm784, %v1267, 0
        %1274 = vmatpush.bf16.xpose.msra.mxu0 0
        %1275 = vmatpush.bf16.xpose.msra.mxu0 0
        %1276 = vmatpush.bf16.xpose.msra.mxu0 0
        %1277 = vmatpush.bf16.xpose.msra.mxu0 0
        %1278 = vmatpush.bf16.xpose.msra.mxu0 0
        %1279 = vmatpush.bf16.xpose.msra.mxu0 0
        %1280 = vmatpush.bf16.xpose.msra.mxu0 0
        %1281 = vmatpush.bf16.xpose.msra.mxu0 %v1272
        %1282 = vmatmul.bf16.gmra.mxu0 %v1269
        %v1283 = vpop.f32.mrf.mxu0
        %v1284 = vadd.f32 %v779, %v1283
        %v1285 = vpop.f32.mrf.mxu0
        %v1286 = vadd.f32 %v780, %v1285
        %1287 = vdwg.mxu0
        %v1288 = vsel %vm784, %v1284, -inf
        %1289 = vmax.xlane.f32.xlu0 %v1288
        %v1290 = vpop.xlane.xlu0 %1289
        %v1291 = vsel %vm784, %v1286, -inf
        %1292 = vmax.xlane.f32.xlu0 %v1291
        %v1293 = vpop.xlane.xlu0 %1292
        %v1294 = vsub.f32 %v1284, %v1290
        %v1295 = vsub.f32 %v1286, %v1293
        %v1296 = vmul.f32 %v1294, 1.442695
        %v1297 = vpow.pop %v1296
        %v1298 = vmul.f32 %v1295, 1.442695
        %v1299 = vpow.pop %v1298
        %v1300 = vsel %vm784, %v1297, 0.0
        %1301 = vadd.xlane.f32.xlu0 %v1300
        %v1302 = vpop.xlane.xlu0 %1301
        %v1303 = vsel %vm784, %v1299, 0.0
        %1304 = vadd.xlane.f32.xlu0 %v1303
        %v1305 = vpop.xlane.xlu0 %1304
        %v1306 = vrcp.pop %v1302
        %v1307 = vrcp.pop %v1305
        %v1308 = vmul.f32 %v1297, %v1306
        %v1309 = vmul.f32 %v1299, %v1307
        %v1310 = vadd.f32 %v1241, %v1308
        %v1311 = vadd.f32 %v1242, %v1309
        %v1312 = vpack.c.bf16 %v1309, %v1308
        %1313 = vrot.lane.b32.xlu0 %v783, 16
        %v1314 = vpop.permute.xlu0 %1313
        %v1317 = vsel %vm784, %v1312, 0
        %1319 = vmatpush.bf16.msra.mxu0 0
        %1320 = vmatpush.bf16.msra.mxu0 0
        %1321 = vmatpush.bf16.msra.mxu0 0
        %1322 = vmatpush.bf16.msra.mxu0 0
        %1323 = vmatpush.bf16.msra.mxu0 0
        %1324 = vmatpush.bf16.msra.mxu0 0
        %1325 = vmatpush.bf16.msra.mxu0 0
        %1326 = vmatpush.bf16.msra.mxu0 %v1314
        %1327 = vmatmul.bf16.gmra.mxu0 %v1317
        %v1328 = vpop.f32.mrf.mxu0
        %v1329 = vadd.f32 0.0, %v1328
        %v1330 = vpop.f32.mrf.mxu0
        %v1331 = vadd.f32 0.0, %v1330
        %1332 = vdwg.mxu0
        %1335 = vrot.lane.b32.xlu0 %v915, 16
        %v1336 = vpop.permute.xlu0 %1335
        %1337 = vrot.lane.b32.xlu0 %v917, 16
        %v1338 = vpop.permute.xlu0 %1337
        %1343 = vrot.lane.b32.xlu0 %v984, 32
        %v1344 = vpop.permute.xlu0 %1343
        %1345 = vrot.lane.b32.xlu0 %v986, 32
        %v1346 = vpop.permute.xlu0 %1345
        %1351 = vrot.lane.b32.xlu0 %v1053, 48
        %v1352 = vpop.permute.xlu0 %1351
        %1353 = vrot.lane.b32.xlu0 %v1055, 48
        %v1354 = vpop.permute.xlu0 %1353
        %1359 = vrot.lane.b32.xlu0 %v1122, 64
        %v1360 = vpop.permute.xlu0 %1359
        %1361 = vrot.lane.b32.xlu0 %v1124, 64
        %v1362 = vpop.permute.xlu0 %1361
        %1367 = vrot.lane.b32.xlu0 %v1191, 80
        %v1368 = vpop.permute.xlu0 %1367
        %1369 = vrot.lane.b32.xlu0 %v1193, 80
        %v1370 = vpop.permute.xlu0 %1369
        %1375 = vrot.lane.b32.xlu0 %v1260, 96
        %v1376 = vpop.permute.xlu0 %1375
        %1377 = vrot.lane.b32.xlu0 %v1262, 96
        %v1378 = vpop.permute.xlu0 %1377
        %1383 = vrot.lane.b32.xlu0 %v1329, 112
        %v1384 = vpop.permute.xlu0 %1383
        %1385 = vrot.lane.b32.xlu0 %v1331, 112
        %v1386 = vpop.permute.xlu0 %1385
        %v1389 = vsel %vm784, %v843, %v1336
        %v1390 = vsel %vm784, %v845, %v1338
        %vm1391 = vcmask 261120
        %v1392 = vsel %vm1391, %v1389, %v1344
        %v1393 = vsel %vm1391, %v1390, %v1346
        %vm1394 = vcmask 392192
        %v1395 = vsel %vm1394, %v1392, %v1352
        %v1396 = vsel %vm1394, %v1393, %v1354
        %vm1397 = vcmask 523264
        %v1398 = vsel %vm1397, %v1395, %v1360
        %v1399 = vsel %vm1397, %v1396, %v1362
        %vm1400 = vcmask 654336
        %v1401 = vsel %vm1400, %v1398, %v1368
        %v1402 = vsel %vm1400, %v1399, %v1370
        %vm1403 = vcmask 785408
        %v1404 = vsel %vm1403, %v1401, %v1376
        %v1405 = vsel %vm1403, %v1402, %v1378
        %vm1406 = vcmask 916480
        %v1407 = vsel %vm1406, %v1404, %v1384
        %v1408 = vsel %vm1406, %v1405, %v1386
        %v1409 = vmul.f32 %v1310, 0.125
        %v1410 = vmul.f32 %v1311, 0.125
        %v1411 = vpack.c.bf16 %v1408, %v1407
        %v1412 = vld [vmem:[#allocation10] sm:$0xf]
        %v1413 = vld [vmem:[#allocation10 + $0x4] sm:$0xf]
        %v1414 = vld [vmem:[#allocation10 + $0x8] sm:$0xf]
        %v1415 = vld [vmem:[#allocation10 + $0xc] sm:$0xf]
        %v1416 = vld [vmem:[#allocation10 + $0x10] sm:$0xf]
        %v1417 = vld [vmem:[#allocation10 + $0x14] sm:$0xf]
        %v1418 = vld [vmem:[#allocation10 + $0x18] sm:$0xf]
        %v1419 = vld [vmem:[#allocation10 + $0x1c] sm:$0xf]
        %v1420 = vld [vmem:[#allocation10 + $0x20] sm:$0xf]
        %v1421 = vld [vmem:[#allocation10 + $0x24] sm:$0xf]
        %v1422 = vld [vmem:[#allocation10 + $0x28] sm:$0xf]
        %v1423 = vld [vmem:[#allocation10 + $0x2c] sm:$0xf]
        %v1424 = vld [vmem:[#allocation10 + $0x30] sm:$0xf]
        %v1425 = vld [vmem:[#allocation10 + $0x34] sm:$0xf]
        %v1426 = vld [vmem:[#allocation10 + $0x38] sm:$0xf]
        %v1427 = vld [vmem:[#allocation10 + $0x3c] sm:$0xf]
        %v1428 = vld [vmem:[#allocation11] sm:$0x1]
        %v1430 = vperm.slane %v1428, 0
        %v1448 = vunpack.c.l.b16 %v1412
        %v1449 = vunpack.c.l.b16 %v1413
        %v1450 = vunpack.c.l.b16 %v1414
        %v1451 = vunpack.c.l.b16 %v1415
        %v1452 = vunpack.c.l.b16 %v1416
        %v1453 = vunpack.c.l.b16 %v1417
        %v1454 = vunpack.c.l.b16 %v1418
        %v1455 = vunpack.c.l.b16 %v1419
        %v1456 = vunpack.c.l.b16 %v1420
        %v1457 = vunpack.c.l.b16 %v1421
        %v1458 = vunpack.c.l.b16 %v1422
        %v1459 = vunpack.c.l.b16 %v1423
        %v1460 = vunpack.c.l.b16 %v1424
        %v1461 = vunpack.c.l.b16 %v1425
        %v1462 = vunpack.c.l.b16 %v1426
        %v1463 = vunpack.c.l.b16 %v1427
        %v1464 = vpack.c.b16 %v1449, %v1448
        %v1465 = vpack.c.b16 %v1451, %v1450
        %v1466 = vpack.c.b16 %v1453, %v1452
        %v1467 = vpack.c.b16 %v1455, %v1454
        %v1468 = vpack.c.b16 %v1457, %v1456
        %v1469 = vpack.c.b16 %v1459, %v1458
        %v1470 = vpack.c.b16 %v1461, %v1460
        %v1471 = vpack.c.b16 %v1463, %v1462
        %1480 = vmatpush.bf16.msra.mxu0 %v1471
        %1481 = vmatpush.bf16.msra.mxu0 %v1470
        %1482 = vmatpush.bf16.msra.mxu0 %v1469
        %1483 = vmatpush.bf16.msra.mxu0 %v1468
        %1484 = vmatpush.bf16.msra.mxu0 %v1467
        %1485 = vmatpush.bf16.msra.mxu0 %v1466
        %1486 = vmatpush.bf16.msra.mxu0 %v1465
        %1487 = vmatpush.bf16.msra.mxu0 %v1464
        %1488 = vmatmul.bf16.gmra.mxu0 %v1411
        %v1489 = vpop.f32.mrf.mxu0
        %v1490 = vadd.f32 %v1430, %v1489
        %v1491 = vpop.f32.mrf.mxu0
        %v1492 = vadd.f32 %v1430, %v1491
        %1493 = vdwg.mxu0
        %v1494 = vadd.f32 %v499, %v1490
        %v1495 = vadd.f32 %v500, %v1492
        %1496 = vst [vmem:[%s487] sm:$0xff] %v1494
        %1497 = vst [vmem:[%s487 + $0x8] sm:$0xff] %v1495
        %1498 = vst.msk [vmem:[%s494] sm:$0xff] %vm784, %v1409
        %1499 = vst.msk [vmem:[%s494 + $0x8] sm:$0xff] %vm784, %v1410
        %s1500 = sand.u32 %s241, 1
        %s1501 = scalar_lea.sflag [#allocation4], %s1500
        %s1502 = sand.u32 %s241, 1
        %s1503 = smul.addr %s1502, 16
        %s1504 = scalar_lea.vmem [#allocation14], %s1503
        %s1505 = sand.u32 %s267, 1
        %s1506 = scalar_lea.sflag [#allocation16], %s1505
        %s1507 = sand.u32 %s267, 1
        %s1508 = smul.addr %s1507, 16
        %s1509 = scalar_lea.vmem [#allocation15], %s1508
        // Predicated region
        $region85: #{tpu_custom_call.1} parent=55 // pred_check
          %p1510 = pneg %p251
        $region86: #{tpu_custom_call.1} parent=55 // pred_check_branch
          %1512 = sbr.rel (%p1510) target = $region88
        $region87: #{tpu_custom_call.1} parent=55 // pred_region
          %1514 = vsyncadd %s1501, 0
          %s1515 = smul.addr %s34, 2
          %s1516 = smul.addr %s1515, 8
          %s1517 = scalar_lea.hbm %s9, %s1516
          %s1518 = sshll.u32 %s1504, 4
          %s1519 = int_to_ptr.vmem [resolvable:$true] %s1518
          %s1520 = sshll.u32 %s1517, 4
          %s1521 = int_to_ptr.hbm [resolvable:$true] %s1520
          %1526 = dma.vmem_to_hbm [thread:$0]  %s1519, 256, %s1521, %s1501, 128, 128, 8
        $region88: #{tpu_custom_call.1} parent=55 // pred_fallthru
          _
        // Predicated region
        $region89: #{tpu_custom_call.1} parent=55 // pred_check
          %p1527 = pneg %p277
        $region90: #{tpu_custom_call.1} parent=55 // pred_check_branch
          %1529 = sbr.rel (%p1527) target = $region92
        $region91: #{tpu_custom_call.1} parent=55 // pred_region
          %1531 = vsyncadd %s1506, 0
          %s1532 = smul.addr %s34, 2
          %s1533 = smul.addr %s1532, 8
          %s1534 = scalar_lea.hbm %s10, %s1533
          %s1535 = sshll.u32 %s1509, 4
          %s1536 = int_to_ptr.vmem [resolvable:$true] %s1535
          %s1537 = sshll.u32 %s1534, 4
          %s1538 = int_to_ptr.hbm [resolvable:$true] %s1537
          %1543 = dma.vmem_to_hbm [thread:$0]  %s1536, 256, %s1538, %s1506, 128, 128, 8
        $region92: #{tpu_custom_call.1} parent=55 // pred_fallthru
          _
      $region56: #{tpu_custom_call.1} parent=5 // pred_fallthru
        _
      %p1544 = scmp.le.s32.totalorder 2, %s29
      // Predicated region
      $region93: #{tpu_custom_call.1} parent=5 // pred_check
        %p1545 = pneg %p1544
      $region94: #{tpu_custom_call.1} parent=5 // pred_check_branch
        %1547 = sbr.rel (%p1545) target = $region96
      $region95: #{tpu_custom_call.1} parent=5 // pred_region
        %s1548 = ssub.s32 %s29, 2
        // Predicated region
        $region97: #{tpu_custom_call.1} parent=95 // pred_check
          %p1549 = pneg %p257
        $region98: #{tpu_custom_call.1} parent=95 // pred_check_branch
          %1551 = sbr.rel (%p1549) target = $region100
        $region99: #{tpu_custom_call.1} parent=95 // pred_region
          %s1552 = sand.u32 %s242, 1
          %s1553 = scalar_lea.sflag [#allocation4], %s1552
          %s1554 = sand.u32 %s242, 1
          %s1555 = smul.addr %s1554, 16
          %s1556 = scalar_lea.vmem [#allocation14], %s1555
          %1558 = dma.done %s1553, 256
        $region100: #{tpu_custom_call.1} parent=95 // pred_fallthru
          _
        // Predicated region
        $region101: #{tpu_custom_call.1} parent=95 // pred_check
          %p1559 = pneg %p283
        $region102: #{tpu_custom_call.1} parent=95 // pred_check_branch
          %1561 = sbr.rel (%p1559) target = $region104
        $region103: #{tpu_custom_call.1} parent=95 // pred_region
          %s1562 = sand.u32 %s268, 1
          %s1563 = scalar_lea.sflag [#allocation16], %s1562
          %s1564 = sand.u32 %s268, 1
          %s1565 = smul.addr %s1564, 16
          %s1566 = scalar_lea.vmem [#allocation15], %s1565
          %1568 = dma.done %s1563, 256
        $region104: #{tpu_custom_call.1} parent=95 // pred_fallthru
          _
      $region96: #{tpu_custom_call.1} parent=5 // pred_fallthru
        _
    $region6: #{tpu_custom_call.1} parent=1 // loop_footer
      %s33 = sadd.s32 1, %s29
    $region7: #{tpu_custom_call.1} parent=1 // loop_footer_branch
      %28 = sbr.rel target = $region3
    $region8: #{tpu_custom_call.1} parent=1 // loop_exit
      _
    %1569 = vsyncpa [#allocation3], 1
    %s1570 = scalar_lea.sflag [#allocation3], 1
    %1571 = vsyncpa %s1570, 1
    %1572 = vsyncpa [#allocation6], 1
    %1573 = vsyncpa [#allocation9], 1
    %1574 = vsyncpa [#allocation12], 1
    %1575 = vsyncpa [#allocation4], 1
    %s1576 = scalar_lea.sflag [#allocation4], 1
    %1577 = vsyncpa %s1576, 1
    %1578 = vsyncpa [#allocation16], 1
    %s1579 = scalar_lea.sflag [#allocation16], 1
    %1580 = vsyncpa %s1579, 1

</llo_original>
